<compile_context>
chip_gen: v7x
topology: tpu7x:2x2x1
jax: 0.10.0
libtpu: 0.0.40
codegen_flags: <defaults>
</compile_context>

<pallas_src>
import functools

import jax
import jax.numpy as jnp
from jax.experimental import pallas as pl
from jax.experimental.pallas import tpu as pltpu

IMAGENET_MEAN = (0.485, 0.456, 0.406)
IMAGENET_STD = (0.229, 0.224, 0.225)

CNN_OUT_SIZE = 1280
FC1_SIZE = 128
STEM_CH = 32
K_RAW = 27          # 3 * 3 * 3 im2col columns
K_PAD = 32          # padded to 32 for aligned rows / sublane-multiple K
OUT_PAD = (8, 128)  # per-batch output tile, padded so every block is tile-aligned


def _pick_tile_s(s):
    """Largest row tile that divides S, is a multiple of 8, and is <= 2048."""
    if s <= 2048:
        return s
    for t in range(2048, 7, -8):
        if s % t == 0:
            return t
    return s  # fallback: whole reduction axis as one (full-dim) block


# ------------------------------------------------------------------------------
# im2col for the 3x3 / stride-2 / pad-1 stem conv (pure XLA, same jit as the kernel).
def _extract_patches_3x3_s2(x):
    """(B,H,W,3) raw pixels -> (B, S, 32) bf16 im2col rows.

    The ImageNet mean is subtracted here (fused by XLA into the pad/gather); the
    1/std factor is folded into w_conv, so zero padding of (x - mean) matches
    PyTorch's zero padding of the normalized image exactly.
    """
    B, H, W, _ = x.shape
    assert H % 2 == 0 and W % 2 == 0, "stride-2 stem conv requires even H and W"
    mean = jnp.asarray(IMAGENET_MEAN, jnp.float32)
    xp = jnp.pad(x - mean, ((0, 0), (1, 1), (1, 1), (0, 0)))
    cols = []
    for ky in range(3):
        for kx in range(3):
            cols.append(xp[:, ky:ky + H:2, kx:kx + W:2, :])      # (B, H//2, W//2, 3)
    patches = jnp.concatenate(cols, axis=-1)                      # (B, H//2, W//2, 27)
    patches = patches.reshape(B, (H // 2) * (W // 2), K_RAW)
    patches = jnp.pad(patches, ((0, 0), (0, 0), (0, K_PAD - K_RAW)))
    return patches.astype(jnp.bfloat16)                           # (B, S, 32)


# ------------------------------------------------------------------------------
# Fused kernel over grid (batch, row_tiles):
#   stem conv (im2col matmul + ReLU6) -> GAP accumulate -> [last tile] 1280-d
#   projection -> relu -> fc1(cat(x, action)) -> relu -> fc2.
def _critic_fused_kernel(p_ref, a_ref, wc_ref, bc_ref, wp_ref, bp_ref,
                         w1f_ref, w1a_ref, b1_ref, w2_ref, b2_ref,
                         o_ref, pooled_ref, *, n_tiles):
    b = pl.program_id(0)
    t = pl.program_id(1)

    @pl.when(t == 0)
    def _():
        pooled_ref[...] = jnp.zeros_like(pooled_ref)

    # Stem conv on this row tile: (tile_s, 32)bf16 @ (32, 32)bf16 -> f32 MXU matmul,
    # + bias, ReLU6 (MobileNetV2 stem nonlinearity).  Pixels are pre-mean-subtracted;
    # 1/std is folded into wc.
    stem = jnp.dot(p_ref[0], wc_ref[...], preferred_element_type=jnp.float32)
    stem = jnp.clip(stem + bc_ref[...], 0.0, 6.0)                 # (tile_s, 32)

    # Global-average-pool partial sum: a single cross-sublane reduction per tile;
    # the 1/S scale is folded into w_proj.
    pooled_ref[...] += jnp.sum(stem, axis=0, keepdims=True)       # (1, 32)

    @pl.when(t == n_tiles - 1)
    def _():
        # Backbone stand-in projection 32 -> 1280, then ReLU
        # (matches relu(cnn.features(state).view(B, -1))).
        feat = jnp.dot(pooled_ref[...].astype(jnp.bfloat16), wp_ref[...],
                       preferred_element_type=jnp.float32)
        x = jnp.maximum(feat + bp_ref[...], 0.0)                  # (1, 1280)

        # Select this batch's action row with a mask+reduce (avoids a dynamic
        # sublane slice; the action array is tiny and fully resident).
        row_ids = jax.lax.broadcasted_iota(jnp.int32, a_ref.shape, 0)
        a_row = jnp.sum(jnp.where(row_ids == b, a_ref[...], 0.0),
                        axis=0, keepdims=True)                    # (1, A)

        # fc1 on cat((x, action), dim=1), realized as a split matmul.
        h = jnp.dot(x.astype(jnp.bfloat16), w1f_ref[...],
                    preferred_element_type=jnp.float32)
        h = h + jnp.dot(a_row, w1a_ref[...], preferred_element_type=jnp.float32)
        h = jnp.maximum(h + b1_ref[...], 0.0)                     # (1, 128)

        # fc2 (128 -> 1): lane-wise multiply + cross-lane reduce; scalar bias in SMEM.
        q = jnp.sum(h * w2_ref[...], axis=-1, keepdims=True) + b2_ref[0, 0]
        o_ref[...] = jnp.broadcast_to(q, o_ref.shape)             # fill padded tile


def critic_forward(params, state, action):
    if state.ndim < 4:                       # matches `state.unsqueeze(0)`
        state = state[None]
    state = state.astype(jnp.float32)
    action = action.astype(jnp.float32)
    B, H, W, _ = state.shape
    S = (H // 2) * (W // 2)
    A = action.shape[-1]

    patches = _extract_patches_3x3_s2(state)                      # (B, S, 32) bf16
    tile_s = _pick_tile_s(S)
    n_tiles = S // tile_s

    kernel = functools.partial(_critic_fused_kernel, n_tiles=n_tiles)
    const2 = lambda b, t: (0, 0)

    operands = (patches, action,
                params["w_conv"], params["b_conv"],
                params["w_proj"], params["b_proj"],
                params["w1_feat"], params["w1_act"], params["b1"],
                params["w2"], params["b2"])

    flops = 2 * B * (S * K_PAD * STEM_CH + STEM_CH * CNN_OUT_SIZE
                     + (CNN_OUT_SIZE + A) * FC1_SIZE + FC1_SIZE)
    bytes_accessed = sum(int(x.size) * x.dtype.itemsize for x in operands)
    bytes_accessed += B * OUT_PAD[0] * OUT_PAD[1] * 4

    out3 = pl.pallas_call(
        kernel,
        out_shape=jax.ShapeDtypeStruct((B,) + OUT_PAD, jnp.float32),
        grid_spec=pltpu.PrefetchScalarGridSpec(
            num_scalar_prefetch=0,
            grid=(B, n_tiles),
            in_specs=[
                pl.BlockSpec((1, tile_s, K_PAD), lambda b, t: (b, t, 0)),  # patches
                pl.BlockSpec((B, A), const2),                              # action
                pl.BlockSpec((K_PAD, STEM_CH), const2),                    # w_conv
                pl.BlockSpec((1, STEM_CH), const2),                        # b_conv
                pl.BlockSpec((STEM_CH, CNN_OUT_SIZE), const2),             # w_proj
                pl.BlockSpec((1, CNN_OUT_SIZE), const2),                   # b_proj
                pl.BlockSpec((CNN_OUT_SIZE, FC1_SIZE), const2),            # w1_feat
                pl.BlockSpec((A, FC1_SIZE), const2),                       # w1_act
                pl.BlockSpec((1, FC1_SIZE), const2),                       # b1
                pl.BlockSpec((1, FC1_SIZE), const2),                       # w2
                pl.BlockSpec(memory_space=pltpu.MemorySpace.SMEM),         # b2 scalar
            ],
            out_specs=pl.BlockSpec((1,) + OUT_PAD, lambda b, t: (b, 0, 0)),
            scratch_shapes=[pltpu.VMEM((1, STEM_CH), jnp.float32)],        # GAP acc
        ),
        compiler_params=pltpu.CompilerParams(
            dimension_semantics=("parallel", "arbitrary")),
        cost_estimate=pl.CostEstimate(flops=flops, transcendentals=0,
                                      bytes_accessed=bytes_accessed),
    )(*operands)
    return out3[:, 0, :1]                                         # (B, 1)


# --------------------------------- parameters ---------------------------------
def init_params(key, action_size, input_hw=(32, 32)):
    H, W = input_hw
    assert H % 2 == 0 and W % 2 == 0
    S = (H // 2) * (W // 2)
    ks = jax.random.split(key, 8)

    def _uniform(k, shape, fan_in):
        bound = 1.0 / jnp.sqrt(jnp.float32(fan_in))
        return jax.random.uniform(k, shape, jnp.float32, -bound, bound)

    # stem conv: rows ordered (ky, kx, ci) -> (27, 32), bias (1, 32)
    w_conv = _uniform(ks[0], (K_RAW, STEM_CH), K_RAW)
    b_conv = _uniform(ks[1], (1, STEM_CH), K_RAW)
    # Fold 1/std of the ImageNet normalize into the conv rows (exact; the mean
    # subtraction lives in the im2col wrapper so zero padding matches PyTorch).
    inv_std = jnp.tile(1.0 / jnp.asarray(IMAGENET_STD, jnp.float32), 9)[:, None]
    w_conv = w_conv * inv_std
    # Pad K from 27 -> 32 with zero rows (the patch columns are zero padded too).
    w_conv = jnp.pad(w_conv, ((0, K_PAD - K_RAW), (0, 0)))

    # backbone stand-in projection 32 -> 1280; the GAP's 1/S scale is folded in.
    w_proj = _uniform(ks[2], (STEM_CH, CNN_OUT_SIZE), STEM_CH) / jnp.float32(S)
    b_proj = _uniform(ks[3], (1, CNN_OUT_SIZE), STEM_CH)

    # fc1: (1280 + A) -> 128, split into feature part and action part (concat-as-matmul)
    w1 = _uniform(ks[4], (CNN_OUT_SIZE + action_size, FC1_SIZE),
                  CNN_OUT_SIZE + action_size)
    return {
        # large operands stored bf16 (kernel is HBM-DMA bound); biases / accum stay f32
        "w_conv": w_conv.astype(jnp.bfloat16),
        "b_conv": b_conv,
        "w_proj": w_proj.astype(jnp.bfloat16),
        "b_proj": b_proj,
        "w1_feat": w1[:CNN_OUT_SIZE, :].astype(jnp.bfloat16),
        "w1_act": w1[CNN_OUT_SIZE:, :],                  # tiny, keep f32 (exact)
        "b1": _uniform(ks[5], (1, FC1_SIZE), CNN_OUT_SIZE + action_size),
        # fc2: stored as a (1, 128) row vector + scalar bias (lives in SMEM)
        "w2": _uniform(ks[6], (1, FC1_SIZE), FC1_SIZE),
        "b2": _uniform(ks[7], (1, 1), FC1_SIZE),
    }


# ----------------------------------- demo --------------------------------------
if __name__ == "__main__":
    key = jax.random.PRNGKey(0)
    k_state, k_action, k_params = jax.random.split(key, 3)

    B, H, W, C = 2, 32, 32, 3        # small NHWC image input, even H/W
    action_size = 4

    state = jax.random.uniform(k_state, (B, H, W, C), jnp.float32)   # pixels in [0, 1]
    action = jax.random.normal(k_action, (B, action_size), jnp.float32)

    params = init_params(k_params, action_size, input_hw=(H, W))

    out = jax.jit(critic_forward)(params, state, action)
    out = jax.block_until_ready(out)

    assert out.shape == (B, 1), out.shape
    assert bool(jnp.all(jnp.isfinite(out)))
    print("KERNEL_OK")
</pallas_src>

<mosaic_0001>
module attributes {stable_mosaic.version = 11 : i64} {
  func.func @_critic_fused_kernel(%arg0: i32, %arg1: i32, %arg2: memref<1x256x32xbf16, #tpu.memory_space<vmem>>, %arg3: memref<2x4xf32, #tpu.memory_space<vmem>>, %arg4: memref<32x32xbf16, #tpu.memory_space<vmem>>, %arg5: memref<1x32xf32, #tpu.memory_space<vmem>>, %arg6: memref<32x1280xbf16, #tpu.memory_space<vmem>>, %arg7: memref<1x1280xf32, #tpu.memory_space<vmem>>, %arg8: memref<1280x128xbf16, #tpu.memory_space<vmem>>, %arg9: memref<4x128xf32, #tpu.memory_space<vmem>>, %arg10: memref<1x128xf32, #tpu.memory_space<vmem>>, %arg11: memref<1x128xf32, #tpu.memory_space<vmem>>, %arg12: memref<1x1xf32, #tpu.memory_space<smem>>, %arg13: memref<1x8x128xf32, #tpu.memory_space<vmem>>, %arg14: memref<1x32xf32, #tpu.memory_space<vmem>>) attributes {dimension_semantics = [#tpu.dimension_semantics<parallel>, #tpu.dimension_semantics<arbitrary>], iteration_bounds = array<i64: 2, 1>, scalar_prefetch = 0 : i64, scratch_operands = 1 : i64, tpu.core_type = #tpu.core_type<tc>, window_params = [{transform_indices = @transform_0, window_bounds = array<i64: 1, 256, 32>}, {pipeline_mode = #tpu.pipeline_mode<synchronous>, transform_indices = @transform_1, window_bounds = array<i64: 2, 4>}, {pipeline_mode = #tpu.pipeline_mode<synchronous>, transform_indices = @transform_2, window_bounds = array<i64: 32, 32>}, {pipeline_mode = #tpu.pipeline_mode<synchronous>, transform_indices = @transform_3, window_bounds = array<i64: 1, 32>}, {pipeline_mode = #tpu.pipeline_mode<synchronous>, transform_indices = @transform_4, window_bounds = array<i64: 32, 1280>}, {pipeline_mode = #tpu.pipeline_mode<synchronous>, transform_indices = @transform_5, window_bounds = array<i64: 1, 1280>}, {pipeline_mode = #tpu.pipeline_mode<synchronous>, transform_indices = @transform_6, window_bounds = array<i64: 1280, 128>}, {pipeline_mode = #tpu.pipeline_mode<synchronous>, transform_indices = @transform_7, window_bounds = array<i64: 4, 128>}, {pipeline_mode = #tpu.pipeline_mode<synchronous>, transform_indices = @transform_8, window_bounds = array<i64: 1, 128>}, {pipeline_mode = #tpu.pipeline_mode<synchronous>, transform_indices = @transform_9, window_bounds = array<i64: 1, 128>}, {transform_indices = @transform_10, window_bounds = array<i64: 1, 1>}, {transform_indices = @transform_11, window_bounds = array<i64: 1, 8, 128>}]} {
    %c0_i32 = arith.constant 0 : i32
    %0 = arith.cmpi eq, %arg1, %c0_i32 : i32
    %1 = arith.extui %0 : i1 to i32
    %c0_i32_0 = arith.constant 0 : i32
    %2 = arith.cmpi ne, %1, %c0_i32_0 : i32
    scf.if %2 {
      %cst_16 = arith.constant 0.000000e+00 : f32
      %22 = vector.broadcast %cst_16 : f32 to vector<1x32xf32>
      %c0_17 = arith.constant 0 : index
      %c0_18 = arith.constant 0 : index
      %23 = vector.load %arg14[%c0_17, %c0_18] : memref<1x32xf32, #tpu.memory_space<vmem>>, vector<1x32xf32>
      tpu.vector_store %arg14[%c0_17, %c0_18], %22 {strides = array<i32>} : memref<1x32xf32, #tpu.memory_space<vmem>>, vector<1x32xf32>,
    } else {
    }
    %c0 = arith.constant 0 : index
    %c0_1 = arith.constant 0 : index
    %c0_2 = arith.constant 0 : index
    %3 = vector.load %arg2[%c0, %c0_1, %c0_2] : memref<1x256x32xbf16, #tpu.memory_space<vmem>>, vector<1x256x32xbf16>
    %4 = vector.shape_cast %3 : vector<1x256x32xbf16> to vector<256x32xbf16>
    %c0_3 = arith.constant 0 : index
    %c0_4 = arith.constant 0 : index
    %5 = vector.load %arg4[%c0_3, %c0_4] : memref<32x32xbf16, #tpu.memory_space<vmem>>, vector<32x32xbf16>
    %cst = arith.constant dense<0.000000e+00> : vector<256x32xf32>
    %6 = tpu.matmul %4, %5, %cst {dimension_numbers = #tpu.dot_dimension_numbers<[1], [0], [0], [1], [0, 0, 1, 1], [], []>} : vector<256x32xbf16>, vector<32x32xbf16>, vector<256x32xf32> -> vector<256x32xf32>
    %c0_5 = arith.constant 0 : index
    %c0_6 = arith.constant 0 : index
    %7 = vector.load %arg5[%c0_5, %c0_6] : memref<1x32xf32, #tpu.memory_space<vmem>>, vector<1x32xf32>
    %8 = vector.broadcast %7 : vector<1x32xf32> to vector<256x32xf32>
    %9 = arith.addf %6, %8 : vector<256x32xf32>
    %cst_7 = arith.constant 0.000000e+00 : f32
    %cst_8 = arith.constant 6.000000e+00 : f32
    %10 = vector.broadcast %cst_7 : f32 to vector<256x32xf32>
    %11 = arith.maximumf %10, %9 : vector<256x32xf32>
    %12 = vector.broadcast %cst_8 : f32 to vector<256x32xf32>
    %13 = arith.minimumf %12, %11 : vector<256x32xf32>
    %c0_9 = arith.constant 0 : index
    %c0_10 = arith.constant 0 : index
    %14 = vector.load %arg14[%c0_9, %c0_10] : memref<1x32xf32, #tpu.memory_space<vmem>>, vector<1x32xf32>
    %cst_11 = arith.constant dense<0.000000e+00> : vector<32xf32>
    %15 = vector.multi_reduction <add>, %13, %cst_11 [0] : vector<256x32xf32> to vector<32xf32>
    %16 = vector.shape_cast %15 : vector<32xf32> to vector<1x32xf32>
    %17 = arith.addf %14, %16 : vector<1x32xf32>
    %c0_12 = arith.constant 0 : index
    %c0_13 = arith.constant 0 : index
    %18 = vector.load %arg14[%c0_12, %c0_13] : memref<1x32xf32, #tpu.memory_space<vmem>>, vector<1x32xf32>
    tpu.vector_store %arg14[%c0_12, %c0_13], %17 {strides = array<i32>} : memref<1x32xf32, #tpu.memory_space<vmem>>, vector<1x32xf32>,
    %c0_i32_14 = arith.constant 0 : i32
    %19 = arith.cmpi eq, %arg1, %c0_i32_14 : i32
    %20 = arith.extui %19 : i1 to i32
    %c0_i32_15 = arith.constant 0 : i32
    %21 = arith.cmpi ne, %20, %c0_i32_15 : i32
    scf.if %21 {
      %c0_16 = arith.constant 0 : index
      %c0_17 = arith.constant 0 : index
      %22 = vector.load %arg14[%c0_16, %c0_17] : memref<1x32xf32, #tpu.memory_space<vmem>>, vector<1x32xf32>
      %23 = arith.truncf %22 : vector<1x32xf32> to vector<1x32xbf16>
      %c0_18 = arith.constant 0 : index
      %c0_19 = arith.constant 0 : index
      %24 = vector.load %arg6[%c0_18, %c0_19] : memref<32x1280xbf16, #tpu.memory_space<vmem>>, vector<32x1280xbf16>
      %cst_20 = arith.constant dense<0.000000e+00> : vector<1x1280xf32>
      %25 = tpu.matmul %23, %24, %cst_20 {dimension_numbers = #tpu.dot_dimension_numbers<[1], [0], [0], [1], [0, 0, 1, 1], [], []>} : vector<1x32xbf16>, vector<32x1280xbf16>, vector<1x1280xf32> -> vector<1x1280xf32>
      %c0_21 = arith.constant 0 : index
      %c0_22 = arith.constant 0 : index
      %26 = vector.load %arg7[%c0_21, %c0_22] : memref<1x1280xf32, #tpu.memory_space<vmem>>, vector<1x1280xf32>
      %27 = arith.addf %25, %26 : vector<1x1280xf32>
      %cst_23 = arith.constant 0.000000e+00 : f32
      %28 = vector.broadcast %cst_23 : f32 to vector<1x1280xf32>
      %29 = arith.maximumf %27, %28 : vector<1x1280xf32>
      %30 = tpu.iota {dimensions = array<i32: 0>} : vector<2x4xi32>
      %31 = vector.broadcast %arg0 : i32 to vector<2x4xi32>
      %32 = arith.cmpi eq, %30, %31 : vector<2x4xi32>
      %c0_24 = arith.constant 0 : index
      %c0_25 = arith.constant 0 : index
      %33 = vector.load %arg3[%c0_24, %c0_25] : memref<2x4xf32, #tpu.memory_space<vmem>>, vector<2x4xf32>
      %cst_26 = arith.constant 0.000000e+00 : f32
      %34 = vector.broadcast %cst_26 : f32 to vector<2x4xf32>
      %35 = arith.select %32, %33, %34 : vector<2x4xi1>, vector<2x4xf32>
      %cst_27 = arith.constant dense<0.000000e+00> : vector<4xf32>
      %36 = vector.multi_reduction <add>, %35, %cst_27 [0] : vector<2x4xf32> to vector<4xf32>
      %37 = vector.shape_cast %36 : vector<4xf32> to vector<1x4xf32>
      %38 = arith.truncf %29 : vector<1x1280xf32> to vector<1x1280xbf16>
      %c0_28 = arith.constant 0 : index
      %c0_29 = arith.constant 0 : index
      %39 = vector.load %arg8[%c0_28, %c0_29] : memref<1280x128xbf16, #tpu.memory_space<vmem>>, vector<1280x128xbf16>
      %cst_30 = arith.constant dense<0.000000e+00> : vector<1x128xf32>
      %40 = tpu.matmul %38, %39, %cst_30 {dimension_numbers = #tpu.dot_dimension_numbers<[1], [0], [0], [1], [0, 0, 1, 1], [], []>} : vector<1x1280xbf16>, vector<1280x128xbf16>, vector<1x128xf32> -> vector<1x128xf32>
      %c0_31 = arith.constant 0 : index
      %c0_32 = arith.constant 0 : index
      %41 = vector.load %arg9[%c0_31, %c0_32] : memref<4x128xf32, #tpu.memory_space<vmem>>, vector<4x128xf32>
      %cst_33 = arith.constant dense<0.000000e+00> : vector<1x128xf32>
      %42 = tpu.matmul %37, %41, %cst_33 {dimension_numbers = #tpu.dot_dimension_numbers<[1], [0], [0], [1], [0, 0, 1, 1], [], []>} : vector<1x4xf32>, vector<4x128xf32>, vector<1x128xf32> -> vector<1x128xf32>
      %43 = arith.addf %40, %42 : vector<1x128xf32>
      %c0_34 = arith.constant 0 : index
      %c0_35 = arith.constant 0 : index
      %44 = vector.load %arg10[%c0_34, %c0_35] : memref<1x128xf32, #tpu.memory_space<vmem>>, vector<1x128xf32>
      %45 = arith.addf %43, %44 : vector<1x128xf32>
      %cst_36 = arith.constant 0.000000e+00 : f32
      %46 = vector.broadcast %cst_36 : f32 to vector<1x128xf32>
      %47 = arith.maximumf %45, %46 : vector<1x128xf32>
      %c0_37 = arith.constant 0 : index
      %c0_38 = arith.constant 0 : index
      %48 = vector.load %arg11[%c0_37, %c0_38] : memref<1x128xf32, #tpu.memory_space<vmem>>, vector<1x128xf32>
      %49 = arith.mulf %47, %48 : vector<1x128xf32>
      %cst_39 = arith.constant dense<0.000000e+00> : vector<1xf32>
      %50 = vector.multi_reduction <add>, %49, %cst_39 [1] : vector<1x128xf32> to vector<1xf32>
      %51 = vector.shape_cast %50 : vector<1xf32> to vector<1x1xf32>
      %c0_40 = arith.constant 0 : index
      %c0_41 = arith.constant 0 : index
      %52 = memref.load %arg12[%c0_40, %c0_41] : memref<1x1xf32, #tpu.memory_space<smem>>
      %53 = vector.broadcast %52 : f32 to vector<1x1xf32>
      %54 = arith.addf %51, %53 : vector<1x1xf32>
      %55 = vector.shape_cast %54 : vector<1x1xf32> to vector<1x1x1xf32>
      %56 = vector.broadcast %55 : vector<1x1x1xf32> to vector<1x8x128xf32>
      %c0_42 = arith.constant 0 : index
      %c0_43 = arith.constant 0 : index
      %c0_44 = arith.constant 0 : index
      %57 = vector.load %arg13[%c0_42, %c0_43, %c0_44] : memref<1x8x128xf32, #tpu.memory_space<vmem>>, vector<1x8x128xf32>
      tpu.vector_store %arg13[%c0_42, %c0_43, %c0_44], %56 {strides = array<i32>} : memref<1x8x128xf32, #tpu.memory_space<vmem>>, vector<1x8x128xf32>,
    } else {
    }
    return
  }
  func.func @transform_0(%arg0: i32, %arg1: i32) -> (i32, i32, i32) {
    %c0_i32 = arith.constant 0 : i32
    %c0_i32_0 = arith.constant 0 : i32
    return %arg0, %arg1, %c0_i32 : i32, i32, i32
  }
  func.func @transform_1(%arg0: i32, %arg1: i32) -> (i32, i32) {
    %c0_i32 = arith.constant 0 : i32
    %c0_i32_0 = arith.constant 0 : i32
    %c0_i32_1 = arith.constant 0 : i32
    return %c0_i32, %c0_i32_0 : i32, i32
  }
  func.func @transform_2(%arg0: i32, %arg1: i32) -> (i32, i32) {
    %c0_i32 = arith.constant 0 : i32
    %c0_i32_0 = arith.constant 0 : i32
    %c0_i32_1 = arith.constant 0 : i32
    return %c0_i32, %c0_i32_0 : i32, i32
  }
  func.func @transform_3(%arg0: i32, %arg1: i32) -> (i32, i32) {
    %c0_i32 = arith.constant 0 : i32
    %c0_i32_0 = arith.constant 0 : i32
    %c0_i32_1 = arith.constant 0 : i32
    return %c0_i32, %c0_i32_0 : i32, i32
  }
  func.func @transform_4(%arg0: i32, %arg1: i32) -> (i32, i32) {
    %c0_i32 = arith.constant 0 : i32
    %c0_i32_0 = arith.constant 0 : i32
    %c0_i32_1 = arith.constant 0 : i32
    return %c0_i32, %c0_i32_0 : i32, i32
  }
  func.func @transform_5(%arg0: i32, %arg1: i32) -> (i32, i32) {
    %c0_i32 = arith.constant 0 : i32
    %c0_i32_0 = arith.constant 0 : i32
    %c0_i32_1 = arith.constant 0 : i32
    return %c0_i32, %c0_i32_0 : i32, i32
  }
  func.func @transform_6(%arg0: i32, %arg1: i32) -> (i32, i32) {
    %c0_i32 = arith.constant 0 : i32
    %c0_i32_0 = arith.constant 0 : i32
    %c0_i32_1 = arith.constant 0 : i32
    return %c0_i32, %c0_i32_0 : i32, i32
  }
  func.func @transform_7(%arg0: i32, %arg1: i32) -> (i32, i32) {
    %c0_i32 = arith.constant 0 : i32
    %c0_i32_0 = arith.constant 0 : i32
    %c0_i32_1 = arith.constant 0 : i32
    return %c0_i32, %c0_i32_0 : i32, i32
  }
  func.func @transform_8(%arg0: i32, %arg1: i32) -> (i32, i32) {
    %c0_i32 = arith.constant 0 : i32
    %c0_i32_0 = arith.constant 0 : i32
    %c0_i32_1 = arith.constant 0 : i32
    return %c0_i32, %c0_i32_0 : i32, i32
  }
  func.func @transform_9(%arg0: i32, %arg1: i32) -> (i32, i32) {
    %c0_i32 = arith.constant 0 : i32
    %c0_i32_0 = arith.constant 0 : i32
    %c0_i32_1 = arith.constant 0 : i32
    return %c0_i32, %c0_i32_0 : i32, i32
  }
  func.func @transform_10(%arg0: i32, %arg1: i32) -> (i32, i32) {
    %c0_i32 = arith.constant 0 : i32
    %c0_i32_0 = arith.constant 0 : i32
    %c0_i32_1 = arith.constant 0 : i32
    return %c0_i32, %c0_i32_0 : i32, i32
  }
  func.func @transform_11(%arg0: i32, %arg1: i32) -> (i32, i32, i32) {
    %c0_i32 = arith.constant 0 : i32
    %c0_i32_0 = arith.constant 0 : i32
    %c0_i32_1 = arith.constant 0 : i32
    return %arg0, %c0_i32, %c0_i32_0 : i32, i32, i32
  }
}

</mosaic_0001>

<llo_original>
// kernel: critic_forward.1
$region0: #{critic_forward.1}
  #allocation0 [shape = 'u32[]', space=smem, size = 0x4, offset = 0x4, fixed_abs, tag = 'smem constant byte address 0x4 - core index']
  #allocation1 [shape = 'u32[144,128]{1,0:T(1,128)}', space=vmem, size = 0x12000, scoped, tag = 'internal scratch']
  #allocation2 [shape = 'f32[1,32]{1,0:T(1,128)}', space=vmem, size = 0x200, scoped, tag = 'scratch operand']
  #allocation3 [shape = 'f32[1,1]{1,0:T(1,128)S(6)}', space=smem, size = 0x200, scoped, tag = 'scoped memory for critic_forward.1']
  %s0 = inlined_call_operand.vmem [shape: bf16[2,256,32], index: 0, kind: input, shape index: {}]
  %s1 = inlined_call_operand.vmem [shape: f32[2,4], index: 1, kind: input, shape index: {}]
  %s2 = inlined_call_operand.vmem [shape: bf16[32,32], index: 2, kind: input, shape index: {}]
  %s3 = inlined_call_operand.vmem [shape: f32[1,32], index: 3, kind: input, shape index: {}]
  %s4 = inlined_call_operand.vmem [shape: bf16[32,1280], index: 4, kind: input, shape index: {}]
  %s5 = inlined_call_operand.vmem [shape: f32[1,1280], index: 5, kind: input, shape index: {}]
  %s6 = inlined_call_operand.vmem [shape: bf16[1280,128], index: 6, kind: input, shape index: {}]
  %s7 = inlined_call_operand.vmem [shape: f32[4,128], index: 7, kind: input, shape index: {}]
  %s8 = inlined_call_operand.vmem [shape: f32[1,128], index: 8, kind: input, shape index: {}]
  %s9 = inlined_call_operand.vmem [shape: f32[1,128], index: 9, kind: input, shape index: {}]
  %s10 = inlined_call_operand.<no memory space> [shape: f32[1,1], index: 10, kind: input, shape index: {}]
  %s11 = inlined_call_operand.vmem [shape: f32[2,8,128], index: 11, kind: output, shape index: {}]
  %s12 = sld [smem:[#allocation0]]
  $region85: #{critic_forward.1} parent=0
    _
  %s14 = ssub.s32 1, %s12
  %s15 = scalar_select 0, %s14, %s12
  %16 = sst [smem:[#allocation3]] %s10
  loop: start=0, step=1, limit=4
  $region2: #{critic_forward.1} parent=0 // loop_pre_header
    _
  $region3: #{critic_forward.1} parent=0 // loop_header
    %s18 = sphi 0, %s22
    %p19 = scmp.ge.s32.totalorder %s18, 4
    %s25 = sphi 0, %s37
    %s26 = sphi 0, %s33
    %s27 = sphi 0, %s25
    %s28 = sphi 0, %s26
    %s29 = sphi 0, %s27
    %s30 = sphi 0, %s28
    %s42 = sphi 0, %s44
    %s45 = sphi 0, %s42
    %s46 = sphi 0, %s45
    %s62 = sphi 0, %s46
    %s66 = sphi 0, %s66
    %s68 = sphi 0, %s66
    %s69 = sphi 0, %s68
    %s83 = sphi 0, %s69
    %s87 = sphi 0, %s87
    %s89 = sphi 0, %s87
    %s90 = sphi 0, %s89
    %s104 = sphi 0, %s90
    %s108 = sphi 0, %s108
    %s110 = sphi 0, %s108
    %s111 = sphi 0, %s110
    %s125 = sphi 0, %s111
    %s129 = sphi 0, %s129
    %s131 = sphi 0, %s129
    %s132 = sphi 0, %s131
    %s146 = sphi 0, %s132
    %s150 = sphi 0, %s150
    %s152 = sphi 0, %s150
    %s153 = sphi 0, %s152
    %s167 = sphi 0, %s153
    %s171 = sphi 0, %s171
    %s173 = sphi 0, %s171
    %s174 = sphi 0, %s173
    %s188 = sphi 0, %s174
    %s192 = sphi 0, %s192
    %s194 = sphi 0, %s192
    %s195 = sphi 0, %s194
    %s209 = sphi 0, %s195
    %s213 = sphi 0, %s213
    %s215 = sphi 0, %s213
    %s216 = sphi 0, %s215
    %s230 = sphi 0, %s216
    %s234 = sphi 0, %s234
    %s236 = sphi 0, %s234
    %s237 = sphi 0, %s236
    %s251 = sphi 0, %s237
    %s255 = sphi 0, %s255
    %s257 = sphi 0, %s255
    %s258 = sphi 0, %s257
    %s272 = sphi 0, %s258
    %s278 = sphi 0, %s280
    %s281 = sphi 0, %s278
    %s282 = sphi 0, %s281
    %s298 = sphi 0, %s282
  $region4: #{critic_forward.1} parent=0 // loop_header_branch
    %21 = sbr.rel (%p19) target = $region8
  $region5: #{critic_forward.1} parent=0 // loop_body
    %s23 = ssub.s32 %s18, 1
    %s24 = ssub.s32 %s18, 2
    %s31 = sadd.s32 1, %s26
    %p32 = scmp.ge.s32.totalorder %s31, 1
    %s33 = scalar_select %p32, 0, %s31
    %s34 = sadd.s32 1, %s25
    %s35 = scalar_select %p32, %s34, %s25
    %p36 = scmp.ge.s32.totalorder %s35, 2
    %s37 = scalar_select %p36, 0, %s35
    %s38 = ssub.s32 %s25, %s37
    %s39 = ssub.s32 %s26, %s33
    %s40 = sor.u32 %s38, %s39
    %p41 = scmp.eq.s32.totalorder %s40, 0
    %s43 = sadd.s32 %s42, 1
    %s44 = scalar_select %p41, %s42, %s43
    %p47 = pneg %p41
    %p48 = scmp.eq.s32.totalorder %s18, 1
    %p49 = por %p47, %p48
    %p50 = scmp.ne.s32.totalorder %s42, %s45
    %p51 = scmp.eq.s32.totalorder %s18, 0
    %p52 = por %p50, %p51
    %p53 = scmp.ne.s32.totalorder %s42, %s45
    %p54 = scmp.eq.s32.totalorder %s23, 1
    %p55 = por %p53, %p54
    %p56 = scmp.ne.s32.totalorder %s45, %s46
    %p57 = scmp.eq.s32.totalorder %s23, 0
    %p58 = por %p56, %p57
    %p59 = scmp.ne.s32.totalorder %s45, %s46
    %p60 = scmp.eq.s32.totalorder %s24, 1
    %p61 = por %p59, %p60
    %p63 = scmp.ne.s32.totalorder %s46, %s62
    %p64 = scmp.eq.s32.totalorder %s24, 0
    %p65 = por %p63, %p64
    %s67 = sadd.s32 %s66, 1
    %p70 = scmp.eq.s32.totalorder %s18, 1
    %p71 = scmp.ne.s32.totalorder %s66, %s68
    %p72 = scmp.eq.s32.totalorder %s18, 0
    %p73 = por %p71, %p72
    %p74 = scmp.ne.s32.totalorder %s66, %s68
    %p75 = scmp.eq.s32.totalorder %s23, 1
    %p76 = por %p74, %p75
    %p77 = scmp.ne.s32.totalorder %s68, %s69
    %p78 = scmp.eq.s32.totalorder %s23, 0
    %p79 = por %p77, %p78
    %p80 = scmp.ne.s32.totalorder %s68, %s69
    %p81 = scmp.eq.s32.totalorder %s24, 1
    %p82 = por %p80, %p81
    %p84 = scmp.ne.s32.totalorder %s69, %s83
    %p85 = scmp.eq.s32.totalorder %s24, 0
    %p86 = por %p84, %p85
    %s88 = sadd.s32 %s87, 1
    %p91 = scmp.eq.s32.totalorder %s18, 1
    %p92 = scmp.ne.s32.totalorder %s87, %s89
    %p93 = scmp.eq.s32.totalorder %s18, 0
    %p94 = por %p92, %p93
    %p95 = scmp.ne.s32.totalorder %s87, %s89
    %p96 = scmp.eq.s32.totalorder %s23, 1
    %p97 = por %p95, %p96
    %p98 = scmp.ne.s32.totalorder %s89, %s90
    %p99 = scmp.eq.s32.totalorder %s23, 0
    %p100 = por %p98, %p99
    %p101 = scmp.ne.s32.totalorder %s89, %s90
    %p102 = scmp.eq.s32.totalorder %s24, 1
    %p103 = por %p101, %p102
    %p105 = scmp.ne.s32.totalorder %s90, %s104
    %p106 = scmp.eq.s32.totalorder %s24, 0
    %p107 = por %p105, %p106
    %s109 = sadd.s32 %s108, 1
    %p112 = scmp.eq.s32.totalorder %s18, 1
    %p113 = scmp.ne.s32.totalorder %s108, %s110
    %p114 = scmp.eq.s32.totalorder %s18, 0
    %p115 = por %p113, %p114
    %p116 = scmp.ne.s32.totalorder %s108, %s110
    %p117 = scmp.eq.s32.totalorder %s23, 1
    %p118 = por %p116, %p117
    %p119 = scmp.ne.s32.totalorder %s110, %s111
    %p120 = scmp.eq.s32.totalorder %s23, 0
    %p121 = por %p119, %p120
    %p122 = scmp.ne.s32.totalorder %s110, %s111
    %p123 = scmp.eq.s32.totalorder %s24, 1
    %p124 = por %p122, %p123
    %p126 = scmp.ne.s32.totalorder %s111, %s125
    %p127 = scmp.eq.s32.totalorder %s24, 0
    %p128 = por %p126, %p127
    %s130 = sadd.s32 %s129, 1
    %p133 = scmp.eq.s32.totalorder %s18, 1
    %p134 = scmp.ne.s32.totalorder %s129, %s131
    %p135 = scmp.eq.s32.totalorder %s18, 0
    %p136 = por %p134, %p135
    %p137 = scmp.ne.s32.totalorder %s129, %s131
    %p138 = scmp.eq.s32.totalorder %s23, 1
    %p139 = por %p137, %p138
    %p140 = scmp.ne.s32.totalorder %s131, %s132
    %p141 = scmp.eq.s32.totalorder %s23, 0
    %p142 = por %p140, %p141
    %p143 = scmp.ne.s32.totalorder %s131, %s132
    %p144 = scmp.eq.s32.totalorder %s24, 1
    %p145 = por %p143, %p144
    %p147 = scmp.ne.s32.totalorder %s132, %s146
    %p148 = scmp.eq.s32.totalorder %s24, 0
    %p149 = por %p147, %p148
    %s151 = sadd.s32 %s150, 1
    %p154 = scmp.eq.s32.totalorder %s18, 1
    %p155 = scmp.ne.s32.totalorder %s150, %s152
    %p156 = scmp.eq.s32.totalorder %s18, 0
    %p157 = por %p155, %p156
    %p158 = scmp.ne.s32.totalorder %s150, %s152
    %p159 = scmp.eq.s32.totalorder %s23, 1
    %p160 = por %p158, %p159
    %p161 = scmp.ne.s32.totalorder %s152, %s153
    %p162 = scmp.eq.s32.totalorder %s23, 0
    %p163 = por %p161, %p162
    %p164 = scmp.ne.s32.totalorder %s152, %s153
    %p165 = scmp.eq.s32.totalorder %s24, 1
    %p166 = por %p164, %p165
    %p168 = scmp.ne.s32.totalorder %s153, %s167
    %p169 = scmp.eq.s32.totalorder %s24, 0
    %p170 = por %p168, %p169
    %s172 = sadd.s32 %s171, 1
    %p175 = scmp.eq.s32.totalorder %s18, 1
    %p176 = scmp.ne.s32.totalorder %s171, %s173
    %p177 = scmp.eq.s32.totalorder %s18, 0
    %p178 = por %p176, %p177
    %p179 = scmp.ne.s32.totalorder %s171, %s173
    %p180 = scmp.eq.s32.totalorder %s23, 1
    %p181 = por %p179, %p180
    %p182 = scmp.ne.s32.totalorder %s173, %s174
    %p183 = scmp.eq.s32.totalorder %s23, 0
    %p184 = por %p182, %p183
    %p185 = scmp.ne.s32.totalorder %s173, %s174
    %p186 = scmp.eq.s32.totalorder %s24, 1
    %p187 = por %p185, %p186
    %p189 = scmp.ne.s32.totalorder %s174, %s188
    %p190 = scmp.eq.s32.totalorder %s24, 0
    %p191 = por %p189, %p190
    %s193 = sadd.s32 %s192, 1
    %p196 = scmp.eq.s32.totalorder %s18, 1
    %p197 = scmp.ne.s32.totalorder %s192, %s194
    %p198 = scmp.eq.s32.totalorder %s18, 0
    %p199 = por %p197, %p198
    %p200 = scmp.ne.s32.totalorder %s192, %s194
    %p201 = scmp.eq.s32.totalorder %s23, 1
    %p202 = por %p200, %p201
    %p203 = scmp.ne.s32.totalorder %s194, %s195
    %p204 = scmp.eq.s32.totalorder %s23, 0
    %p205 = por %p203, %p204
    %p206 = scmp.ne.s32.totalorder %s194, %s195
    %p207 = scmp.eq.s32.totalorder %s24, 1
    %p208 = por %p206, %p207
    %p210 = scmp.ne.s32.totalorder %s195, %s209
    %p211 = scmp.eq.s32.totalorder %s24, 0
    %p212 = por %p210, %p211
    %s214 = sadd.s32 %s213, 1
    %p217 = scmp.eq.s32.totalorder %s18, 1
    %p218 = scmp.ne.s32.totalorder %s213, %s215
    %p219 = scmp.eq.s32.totalorder %s18, 0
    %p220 = por %p218, %p219
    %p221 = scmp.ne.s32.totalorder %s213, %s215
    %p222 = scmp.eq.s32.totalorder %s23, 1
    %p223 = por %p221, %p222
    %p224 = scmp.ne.s32.totalorder %s215, %s216
    %p225 = scmp.eq.s32.totalorder %s23, 0
    %p226 = por %p224, %p225
    %p227 = scmp.ne.s32.totalorder %s215, %s216
    %p228 = scmp.eq.s32.totalorder %s24, 1
    %p229 = por %p227, %p228
    %p231 = scmp.ne.s32.totalorder %s216, %s230
    %p232 = scmp.eq.s32.totalorder %s24, 0
    %p233 = por %p231, %p232
    %s235 = sadd.s32 %s234, 1
    %p238 = scmp.eq.s32.totalorder %s18, 1
    %p239 = scmp.ne.s32.totalorder %s234, %s236
    %p240 = scmp.eq.s32.totalorder %s18, 0
    %p241 = por %p239, %p240
    %p242 = scmp.ne.s32.totalorder %s234, %s236
    %p243 = scmp.eq.s32.totalorder %s23, 1
    %p244 = por %p242, %p243
    %p245 = scmp.ne.s32.totalorder %s236, %s237
    %p246 = scmp.eq.s32.totalorder %s23, 0
    %p247 = por %p245, %p246
    %p248 = scmp.ne.s32.totalorder %s236, %s237
    %p249 = scmp.eq.s32.totalorder %s24, 1
    %p250 = por %p248, %p249
    %p252 = scmp.ne.s32.totalorder %s237, %s251
    %p253 = scmp.eq.s32.totalorder %s24, 0
    %p254 = por %p252, %p253
    %s256 = sadd.s32 %s255, 1
    %p259 = scmp.eq.s32.totalorder %s18, 1
    %p260 = scmp.ne.s32.totalorder %s255, %s257
    %p261 = scmp.eq.s32.totalorder %s18, 0
    %p262 = por %p260, %p261
    %p263 = scmp.ne.s32.totalorder %s255, %s257
    %p264 = scmp.eq.s32.totalorder %s23, 1
    %p265 = por %p263, %p264
    %p266 = scmp.ne.s32.totalorder %s257, %s258
    %p267 = scmp.eq.s32.totalorder %s23, 0
    %p268 = por %p266, %p267
    %p269 = scmp.ne.s32.totalorder %s257, %s258
    %p270 = scmp.eq.s32.totalorder %s24, 1
    %p271 = por %p269, %p270
    %p273 = scmp.ne.s32.totalorder %s258, %s272
    %p274 = scmp.eq.s32.totalorder %s24, 0
    %p275 = por %p273, %p274
    %s276 = ssub.s32 %s25, %s37
    %p277 = scmp.eq.s32.totalorder %s276, 0
    %s279 = sadd.s32 %s278, 1
    %s280 = scalar_select %p277, %s278, %s279
    %p283 = pneg %p277
    %p284 = scmp.eq.s32.totalorder %s18, 1
    %p285 = por %p283, %p284
    %p286 = scmp.ne.s32.totalorder %s278, %s281
    %p287 = scmp.eq.s32.totalorder %s18, 0
    %p288 = por %p286, %p287
    %p289 = scmp.ne.s32.totalorder %s278, %s281
    %p290 = scmp.eq.s32.totalorder %s23, 1
    %p291 = por %p289, %p290
    %p292 = scmp.ne.s32.totalorder %s281, %s282
    %p293 = scmp.eq.s32.totalorder %s23, 0
    %p294 = por %p292, %p293
    %p295 = scmp.ne.s32.totalorder %s281, %s282
    %p296 = scmp.eq.s32.totalorder %s24, 1
    %p297 = por %p295, %p296
    %p299 = scmp.ne.s32.totalorder %s282, %s298
    %p300 = scmp.eq.s32.totalorder %s24, 0
    %p301 = por %p299, %p300
    %p302 = scmp.le.s32.totalorder 1, %s18
    %p303 = scmp.lt.s32.totalorder %s18, 3
    %p304 = pnand %p302, %p303
    %p305 = pneg %p304
    // Predicated region
    $region9: #{critic_forward.1} parent=5 // pred_check
      _
    $region10: #{critic_forward.1} parent=5 // pred_check_branch
      %307 = sbr.rel (%p304) target = $region12
    $region11: #{critic_forward.1} parent=5 // pred_region
      %s308 = ssub.s32 %s18, 1
      // Predicated region
      $region13: #{critic_forward.1} parent=11 // pred_check
        %p309 = pneg %p79
      $region14: #{critic_forward.1} parent=11 // pred_check_branch
        %311 = sbr.rel (%p309) target = $region16
      $region15: #{critic_forward.1} parent=11 // pred_region
        _
      $region16: #{critic_forward.1} parent=11 // pred_fallthru
        _
      // Predicated region
      $region17: #{critic_forward.1} parent=11 // pred_check
        %p312 = pneg %p100
      $region18: #{critic_forward.1} parent=11 // pred_check_branch
        %314 = sbr.rel (%p312) target = $region20
      $region19: #{critic_forward.1} parent=11 // pred_region
        _
      $region20: #{critic_forward.1} parent=11 // pred_fallthru
        _
      // Predicated region
      $region21: #{critic_forward.1} parent=11 // pred_check
        %p315 = pneg %p121
      $region22: #{critic_forward.1} parent=11 // pred_check_branch
        %317 = sbr.rel (%p315) target = $region24
      $region23: #{critic_forward.1} parent=11 // pred_region
        _
      $region24: #{critic_forward.1} parent=11 // pred_fallthru
        _
      // Predicated region
      $region25: #{critic_forward.1} parent=11 // pred_check
        %p318 = pneg %p142
      $region26: #{critic_forward.1} parent=11 // pred_check_branch
        %320 = sbr.rel (%p318) target = $region28
      $region27: #{critic_forward.1} parent=11 // pred_region
        _
      $region28: #{critic_forward.1} parent=11 // pred_fallthru
        _
      // Predicated region
      $region29: #{critic_forward.1} parent=11 // pred_check
        %p321 = pneg %p163
      $region30: #{critic_forward.1} parent=11 // pred_check_branch
        %323 = sbr.rel (%p321) target = $region32
      $region31: #{critic_forward.1} parent=11 // pred_region
        _
      $region32: #{critic_forward.1} parent=11 // pred_fallthru
        _
      // Predicated region
      $region33: #{critic_forward.1} parent=11 // pred_check
        %p324 = pneg %p184
      $region34: #{critic_forward.1} parent=11 // pred_check_branch
        %326 = sbr.rel (%p324) target = $region36
      $region35: #{critic_forward.1} parent=11 // pred_region
        _
      $region36: #{critic_forward.1} parent=11 // pred_fallthru
        _
      // Predicated region
      $region37: #{critic_forward.1} parent=11 // pred_check
        %p327 = pneg %p205
      $region38: #{critic_forward.1} parent=11 // pred_check_branch
        %329 = sbr.rel (%p327) target = $region40
      $region39: #{critic_forward.1} parent=11 // pred_region
        _
      $region40: #{critic_forward.1} parent=11 // pred_fallthru
        _
      // Predicated region
      $region41: #{critic_forward.1} parent=11 // pred_check
        %p330 = pneg %p226
      $region42: #{critic_forward.1} parent=11 // pred_check_branch
        %332 = sbr.rel (%p330) target = $region44
      $region43: #{critic_forward.1} parent=11 // pred_region
        _
      $region44: #{critic_forward.1} parent=11 // pred_fallthru
        _
      // Predicated region
      $region45: #{critic_forward.1} parent=11 // pred_check
        %p333 = pneg %p247
      $region46: #{critic_forward.1} parent=11 // pred_check_branch
        %335 = sbr.rel (%p333) target = $region48
      $region47: #{critic_forward.1} parent=11 // pred_region
        _
      $region48: #{critic_forward.1} parent=11 // pred_fallthru
        _
      // Predicated region
      $region49: #{critic_forward.1} parent=11 // pred_check
        %p336 = pneg %p268
      $region50: #{critic_forward.1} parent=11 // pred_check_branch
        %338 = sbr.rel (%p336) target = $region52
      $region51: #{critic_forward.1} parent=11 // pred_region
        _
      $region52: #{critic_forward.1} parent=11 // pred_fallthru
        _
    $region12: #{critic_forward.1} parent=5 // pred_fallthru
      _
    %p339 = scmp.lt.s32.totalorder %s18, 2
    // Predicated region
    $region53: #{critic_forward.1} parent=5 // pred_check
      %p340 = pneg %p339
    $region54: #{critic_forward.1} parent=5 // pred_check_branch
      %342 = sbr.rel (%p340) target = $region56
    $region55: #{critic_forward.1} parent=5 // pred_region
      // Predicated region
      $region57: #{critic_forward.1} parent=55 // pred_check
        %p343 = pneg %p52
      $region58: #{critic_forward.1} parent=55 // pred_check_branch
        %345 = sbr.rel (%p343) target = $region60
      $region59: #{critic_forward.1} parent=55 // pred_region
        %s346 = smul.u32 32, %s26
        %p347 = scmp.lt.s32.totalorder %s25, 1
        %s348 = scalar_select %p347, %s25, 1
        %p349 = scmp.lt.s32.totalorder %s346, 31
        %s350 = scalar_select %p349, %s346, 31
        %s351 = smul.addr %s348, 32
        %s352 = sadd.s32 %s350, %s351
        %s353 = smul.addr %s352, 4
        %s354 = scalar_lea.vmem %s0, %s353
        %s355 = smul.u32 32, %s26
      $region60: #{critic_forward.1} parent=55 // pred_fallthru
        _
    $region56: #{critic_forward.1} parent=5 // pred_fallthru
      _
    %p356 = scmp.le.s32.totalorder 1, %s18
    %p357 = scmp.lt.s32.totalorder %s18, 3
    %p358 = pnand %p356, %p357
    %p359 = pneg %p358
    // Predicated region
    $region61: #{critic_forward.1} parent=5 // pred_check
      _
    $region62: #{critic_forward.1} parent=5 // pred_check_branch
      %361 = sbr.rel (%p358) target = $region64
    $region63: #{critic_forward.1} parent=5 // pred_region
      %s362 = ssub.s32 %s18, 1
      %s363 = smul.u32 32, %s28
      %p364 = scmp.lt.s32.totalorder %s27, 1
      %s365 = scalar_select %p364, %s27, 1
      %p366 = scmp.lt.s32.totalorder %s363, 31
      %s367 = scalar_select %p366, %s363, 31
      %s368 = smul.addr %s365, 32
      %s369 = sadd.s32 %s367, %s368
      %s370 = smul.addr %s369, 4
      %s371 = scalar_lea.vmem %s0, %s370
      %p372 = pneg %p58
      %p373 = pneg %p55
      %p374 = pneg %p79
      %p375 = pneg %p76
      %p376 = pneg %p100
      %p377 = pneg %p97
      %p378 = pneg %p121
      %p379 = pneg %p118
      %p380 = pneg %p142
      %p381 = pneg %p139
      %p382 = pneg %p163
      %p383 = pneg %p160
      %p384 = pneg %p184
      %p385 = pneg %p181
      %p386 = pneg %p205
      %p387 = pneg %p202
      %p388 = pneg %p226
      %p389 = pneg %p223
      %p390 = pneg %p247
      %p391 = pneg %p244
      %p392 = pneg %p268
      %p393 = pneg %p265
      %p394 = pneg %p294
      %p395 = pneg %p291
      %p396 = scmp.lt.s32.totalorder %s27, 1
      %s397 = scalar_select %p396, %s27, 1
      %s398 = smul.addr %s397, 8
      %s399 = scalar_lea.vmem %s11, %s398
      %s400 = smul.u32 32, %s28
      %p401 = scmp.lt.s32.totalorder %s27, 1
      %s402 = scalar_select %p401, %s27, 1
      %p403 = scmp.lt.s32.totalorder %s400, 31
      %s404 = scalar_select %p403, %s400, 31
      %s405 = smul.addr %s402, 32
      %s406 = sadd.s32 %s404, %s405
      %s407 = smul.addr %s406, 4
      %s408 = scalar_lea.vmem %s0, %s407
      %s409 = smul.u32 32, %s28
      %p410 = scmp.lt.s32.totalorder %s27, 1
      %s411 = scalar_select %p410, %s27, 1
      %s412 = smul.addr %s411, 8
      %s413 = scalar_lea.vmem %s11, %s412
      %p415 = scmp.eq.s32.totalorder %s28, 0
      // Predicated region
      $region65: #{critic_forward.1} parent=63 // pred_check
        %p416 = pneg %p415
      $region66: #{critic_forward.1} parent=63 // pred_check_branch
        %418 = sbr.rel (%p416) target = $region68
      $region67: #{critic_forward.1} parent=63 // pred_region
        %vm419 = vcmask 253952
        %420 = vst.msk [vmem:[#allocation2] sm:$0x1] %vm419, 0.0
      $region68: #{critic_forward.1} parent=63 // pred_fallthru
        _
      %v421 = vld [vmem:[%s408] sm:$0xf]
      %v422 = vld [vmem:[%s408 + $0x4] sm:$0xf]
      %v423 = vld [vmem:[%s408 + $0x8] sm:$0xf]
      %v424 = vld [vmem:[%s408 + $0xc] sm:$0xf]
      %v425 = vld [vmem:[%s408 + $0x10] sm:$0xf]
      %v426 = vld [vmem:[%s408 + $0x14] sm:$0xf]
      %v427 = vld [vmem:[%s408 + $0x18] sm:$0xf]
      %v428 = vld [vmem:[%s408 + $0x1c] sm:$0xf]
      %v429 = vld [vmem:[%s408 + $0x20] sm:$0xf]
      %v430 = vld [vmem:[%s408 + $0x24] sm:$0xf]
      %v431 = vld [vmem:[%s408 + $0x28] sm:$0xf]
      %v432 = vld [vmem:[%s408 + $0x2c] sm:$0xf]
      %v433 = vld [vmem:[%s408 + $0x30] sm:$0xf]
      %v434 = vld [vmem:[%s408 + $0x34] sm:$0xf]
      %v435 = vld [vmem:[%s408 + $0x38] sm:$0xf]
      %v436 = vld [vmem:[%s408 + $0x3c] sm:$0xf]
      %v437 = vld [vmem:[%s408 + $0x40] sm:$0xf]
      %v438 = vld [vmem:[%s408 + $0x44] sm:$0xf]
      %v439 = vld [vmem:[%s408 + $0x48] sm:$0xf]
      %v440 = vld [vmem:[%s408 + $0x4c] sm:$0xf]
      %v441 = vld [vmem:[%s408 + $0x50] sm:$0xf]
      %v442 = vld [vmem:[%s408 + $0x54] sm:$0xf]
      %v443 = vld [vmem:[%s408 + $0x58] sm:$0xf]
      %v444 = vld [vmem:[%s408 + $0x5c] sm:$0xf]
      %v445 = vld [vmem:[%s408 + $0x60] sm:$0xf]
      %v446 = vld [vmem:[%s408 + $0x64] sm:$0xf]
      %v447 = vld [vmem:[%s408 + $0x68] sm:$0xf]
      %v448 = vld [vmem:[%s408 + $0x6c] sm:$0xf]
      %v449 = vld [vmem:[%s408 + $0x70] sm:$0xf]
      %v450 = vld [vmem:[%s408 + $0x74] sm:$0xf]
      %v451 = vld [vmem:[%s408 + $0x78] sm:$0xf]
      %v452 = vld [vmem:[%s408 + $0x7c] sm:$0xf]
      %v453 = vld [vmem:[%s2] sm:$0xf]
      %v454 = vld [vmem:[%s2 + $0x4] sm:$0xf]
      %v455 = vld [vmem:[%s2 + $0x8] sm:$0xf]
      %v456 = vld [vmem:[%s2 + $0xc] sm:$0xf]
      %v457 = vld [vmem:[%s3] sm:$0x1]
      %v459 = vlaneseq
      %v460 = vshrl.u32 %v459, 7
      %v461 = vsub.s32 0, %v460
      %v462 = vrot.slane %v457, %v461
      %v496 = vunpack.c.l.b16 %v421
      %v497 = vunpack.c.l.b16 %v422
      %v498 = vunpack.c.l.b16 %v423
      %v499 = vunpack.c.l.b16 %v424
      %v500 = vunpack.c.l.b16 %v425
      %v501 = vunpack.c.l.b16 %v426
      %v502 = vunpack.c.l.b16 %v427
      %v503 = vunpack.c.l.b16 %v428
      %v504 = vunpack.c.l.b16 %v429
      %v505 = vunpack.c.l.b16 %v430
      %v506 = vunpack.c.l.b16 %v431
      %v507 = vunpack.c.l.b16 %v432
      %v508 = vunpack.c.l.b16 %v433
      %v509 = vunpack.c.l.b16 %v434
      %v510 = vunpack.c.l.b16 %v435
      %v511 = vunpack.c.l.b16 %v436
      %v512 = vunpack.c.l.b16 %v437
      %v513 = vunpack.c.l.b16 %v438
      %v514 = vunpack.c.l.b16 %v439
      %v515 = vunpack.c.l.b16 %v440
      %v516 = vunpack.c.l.b16 %v441
      %v517 = vunpack.c.l.b16 %v442
      %v518 = vunpack.c.l.b16 %v443
      %v519 = vunpack.c.l.b16 %v444
      %v520 = vunpack.c.l.b16 %v445
      %v521 = vunpack.c.l.b16 %v446
      %v522 = vunpack.c.l.b16 %v447
      %v523 = vunpack.c.l.b16 %v448
      %v524 = vunpack.c.l.b16 %v449
      %v525 = vunpack.c.l.b16 %v450
      %v526 = vunpack.c.l.b16 %v451
      %v527 = vunpack.c.l.b16 %v452
      %v528 = vpack.c.b16 %v497, %v496
      %v529 = vpack.c.b16 %v499, %v498
      %v530 = vpack.c.b16 %v501, %v500
      %v531 = vpack.c.b16 %v503, %v502
      %v532 = vpack.c.b16 %v505, %v504
      %v533 = vpack.c.b16 %v507, %v506
      %v534 = vpack.c.b16 %v509, %v508
      %v535 = vpack.c.b16 %v511, %v510
      %v536 = vpack.c.b16 %v513, %v512
      %v537 = vpack.c.b16 %v515, %v514
      %v538 = vpack.c.b16 %v517, %v516
      %v539 = vpack.c.b16 %v519, %v518
      %v540 = vpack.c.b16 %v521, %v520
      %v541 = vpack.c.b16 %v523, %v522
      %v542 = vpack.c.b16 %v525, %v524
      %v543 = vpack.c.b16 %v527, %v526
      %v548 = vunpack.c.l.b16 %v453
      %v549 = vunpack.c.l.b16 %v454
      %v550 = vunpack.c.l.b16 %v455
      %v551 = vunpack.c.l.b16 %v456
      %v552 = vpack.c.b16 %v549, %v548
      %v553 = vpack.c.b16 %v551, %v550
      %vm556 = vcmask 261120
      %v558 = vsel %vm556, %v528, 0
      %v561 = vsel %vm556, %v529, 0
      %v564 = vsel %vm556, %v530, 0
      %v567 = vsel %vm556, %v531, 0
      %v570 = vsel %vm556, %v532, 0
      %v573 = vsel %vm556, %v533, 0
      %v576 = vsel %vm556, %v534, 0
      %v579 = vsel %vm556, %v535, 0
      %v582 = vsel %vm556, %v536, 0
      %v585 = vsel %vm556, %v537, 0
      %v588 = vsel %vm556, %v538, 0
      %v591 = vsel %vm556, %v539, 0
      %v594 = vsel %vm556, %v540, 0
      %v597 = vsel %vm556, %v541, 0
      %v600 = vsel %vm556, %v542, 0
      %v603 = vsel %vm556, %v543, 0
      %605 = vmatprep.subr.bf16.mxu0 0
      %606 = vmatpush1.bf16.msra.mxu0 %v552
      %607 = vmatprep.subr.bf16.mxu0 0
      %608 = vmatpush1.bf16.msra.mxu0 %v553
      %609 = vmatprep.subr.bf16.mxu0 0
      %610 = vmatpush1.bf16.msra.mxu0 0
      %611 = vmatprep.subr.bf16.mxu0 0
      %612 = vmatpush1.bf16.msra.mxu0 0
      %613 = vmatprep.subr.bf16.mxu0 0
      %614 = vmatpush1.bf16.msra.mxu0 0
      %615 = vmatprep.subr.bf16.mxu0 0
      %616 = vmatpush1.bf16.msra.mxu0 0
      %617 = vmatprep.subr.bf16.mxu0 0
      %618 = vmatpush1.bf16.msra.mxu0 0
      %619 = vmatprep.subr.bf16.mxu0 0
      %620 = vmatpush1.bf16.msra.mxu0 0
      %621 = vmatprep.subr.bf16.mxu0 0
      %622 = vmatpush1.bf16.msra.mxu0 0
      %623 = vmatprep.subr.bf16.mxu0 0
      %624 = vmatpush1.bf16.msra.mxu0 0
      %625 = vmatprep.subr.bf16.mxu0 0
      %626 = vmatpush1.bf16.msra.mxu0 0
      %627 = vmatprep.subr.bf16.mxu0 0
      %628 = vmatpush1.bf16.msra.mxu0 0
      %629 = vmatprep.subr.bf16.mxu0 0
      %630 = vmatpush1.bf16.msra.mxu0 0
      %631 = vmatprep.subr.bf16.mxu0 0
      %632 = vmatpush1.bf16.msra.mxu0 0
      %633 = vmatprep.subr.bf16.mxu0 0
      %634 = vmatpush1.bf16.msra.mxu0 0
      %635 = vmatprep.subr.bf16.mxu0 0
      %636 = vmatpush1.bf16.msra.mxu0 0
      %637 = vmatprep.mubr.bf16.mxu0 0
      %638 = vmatmul.mubr.bf16.gmra.mrb[0].mxu0 %v558
      %v639 = vpop.f32.mrb[0].mxu0
      %v640 = vadd.f32 %v462, %v639
      %v641 = vpop.f32.mrb[0].mxu0
      %v642 = vpop.f32.mrb[0].mxu0
      %v643 = vadd.f32 %v462, %v642
      %v644 = vpop.f32.mrb[0].mxu0
      %645 = vmatprep.mubr.bf16.mxu0 0
      %646 = vmatmul.mubr.bf16.gmra.mrb[0].mxu0 %v561
      %v647 = vpop.f32.mrb[0].mxu0
      %v648 = vadd.f32 %v462, %v647
      %v649 = vpop.f32.mrb[0].mxu0
      %v650 = vpop.f32.mrb[0].mxu0
      %v651 = vadd.f32 %v462, %v650
      %v652 = vpop.f32.mrb[0].mxu0
      %653 = vmatprep.mubr.bf16.mxu0 0
      %654 = vmatmul.mubr.bf16.gmra.mrb[0].mxu0 %v564
      %v655 = vpop.f32.mrb[0].mxu0
      %v656 = vadd.f32 %v462, %v655
      %v657 = vpop.f32.mrb[0].mxu0
      %v658 = vpop.f32.mrb[0].mxu0
      %v659 = vadd.f32 %v462, %v658
      %v660 = vpop.f32.mrb[0].mxu0
      %661 = vmatprep.mubr.bf16.mxu0 0
      %662 = vmatmul.mubr.bf16.gmra.mrb[0].mxu0 %v567
      %v663 = vpop.f32.mrb[0].mxu0
      %v664 = vadd.f32 %v462, %v663
      %v665 = vpop.f32.mrb[0].mxu0
      %v666 = vpop.f32.mrb[0].mxu0
      %v667 = vadd.f32 %v462, %v666
      %v668 = vpop.f32.mrb[0].mxu0
      %669 = vmatprep.mubr.bf16.mxu0 0
      %670 = vmatmul.mubr.bf16.gmra.mrb[0].mxu0 %v570
      %v671 = vpop.f32.mrb[0].mxu0
      %v672 = vadd.f32 %v462, %v671
      %v673 = vpop.f32.mrb[0].mxu0
      %v674 = vpop.f32.mrb[0].mxu0
      %v675 = vadd.f32 %v462, %v674
      %v676 = vpop.f32.mrb[0].mxu0
      %677 = vmatprep.mubr.bf16.mxu0 0
      %678 = vmatmul.mubr.bf16.gmra.mrb[0].mxu0 %v573
      %v679 = vpop.f32.mrb[0].mxu0
      %v680 = vadd.f32 %v462, %v679
      %v681 = vpop.f32.mrb[0].mxu0
      %v682 = vpop.f32.mrb[0].mxu0
      %v683 = vadd.f32 %v462, %v682
      %v684 = vpop.f32.mrb[0].mxu0
      %685 = vmatprep.mubr.bf16.mxu0 0
      %686 = vmatmul.mubr.bf16.gmra.mrb[0].mxu0 %v576
      %v687 = vpop.f32.mrb[0].mxu0
      %v688 = vadd.f32 %v462, %v687
      %v689 = vpop.f32.mrb[0].mxu0
      %v690 = vpop.f32.mrb[0].mxu0
      %v691 = vadd.f32 %v462, %v690
      %v692 = vpop.f32.mrb[0].mxu0
      %693 = vmatprep.mubr.bf16.mxu0 0
      %694 = vmatmul.mubr.bf16.gmra.mrb[0].mxu0 %v579
      %v695 = vpop.f32.mrb[0].mxu0
      %v696 = vadd.f32 %v462, %v695
      %v697 = vpop.f32.mrb[0].mxu0
      %v698 = vpop.f32.mrb[0].mxu0
      %v699 = vadd.f32 %v462, %v698
      %v700 = vpop.f32.mrb[0].mxu0
      %701 = vmatprep.mubr.bf16.mxu0 0
      %702 = vmatmul.mubr.bf16.gmra.mrb[0].mxu0 %v582
      %v703 = vpop.f32.mrb[0].mxu0
      %v704 = vadd.f32 %v462, %v703
      %v705 = vpop.f32.mrb[0].mxu0
      %v706 = vpop.f32.mrb[0].mxu0
      %v707 = vadd.f32 %v462, %v706
      %v708 = vpop.f32.mrb[0].mxu0
      %709 = vmatprep.mubr.bf16.mxu0 0
      %710 = vmatmul.mubr.bf16.gmra.mrb[0].mxu0 %v585
      %v711 = vpop.f32.mrb[0].mxu0
      %v712 = vadd.f32 %v462, %v711
      %v713 = vpop.f32.mrb[0].mxu0
      %v714 = vpop.f32.mrb[0].mxu0
      %v715 = vadd.f32 %v462, %v714
      %v716 = vpop.f32.mrb[0].mxu0
      %717 = vmatprep.mubr.bf16.mxu0 0
      %718 = vmatmul.mubr.bf16.gmra.mrb[0].mxu0 %v588
      %v719 = vpop.f32.mrb[0].mxu0
      %v720 = vadd.f32 %v462, %v719
      %v721 = vpop.f32.mrb[0].mxu0
      %v722 = vpop.f32.mrb[0].mxu0
      %v723 = vadd.f32 %v462, %v722
      %v724 = vpop.f32.mrb[0].mxu0
      %725 = vmatprep.mubr.bf16.mxu0 0
      %726 = vmatmul.mubr.bf16.gmra.mrb[0].mxu0 %v591
      %v727 = vpop.f32.mrb[0].mxu0
      %v728 = vadd.f32 %v462, %v727
      %v729 = vpop.f32.mrb[0].mxu0
      %v730 = vpop.f32.mrb[0].mxu0
      %v731 = vadd.f32 %v462, %v730
      %v732 = vpop.f32.mrb[0].mxu0
      %733 = vmatprep.mubr.bf16.mxu0 0
      %734 = vmatmul.mubr.bf16.gmra.mrb[0].mxu0 %v594
      %v735 = vpop.f32.mrb[0].mxu0
      %v736 = vadd.f32 %v462, %v735
      %v737 = vpop.f32.mrb[0].mxu0
      %v738 = vpop.f32.mrb[0].mxu0
      %v739 = vadd.f32 %v462, %v738
      %v740 = vpop.f32.mrb[0].mxu0
      %741 = vmatprep.mubr.bf16.mxu0 0
      %742 = vmatmul.mubr.bf16.gmra.mrb[0].mxu0 %v597
      %v743 = vpop.f32.mrb[0].mxu0
      %v744 = vadd.f32 %v462, %v743
      %v745 = vpop.f32.mrb[0].mxu0
      %v746 = vpop.f32.mrb[0].mxu0
      %v747 = vadd.f32 %v462, %v746
      %v748 = vpop.f32.mrb[0].mxu0
      %749 = vmatprep.mubr.bf16.mxu0 0
      %750 = vmatmul.mubr.bf16.gmra.mrb[0].mxu0 %v600
      %v751 = vpop.f32.mrb[0].mxu0
      %v752 = vadd.f32 %v462, %v751
      %v753 = vpop.f32.mrb[0].mxu0
      %v754 = vpop.f32.mrb[0].mxu0
      %v755 = vadd.f32 %v462, %v754
      %v756 = vpop.f32.mrb[0].mxu0
      %757 = vmatprep.mubr.bf16.mxu0 0
      %758 = vmatmul.mubr.bf16.gmra.mrb[0].mxu0 %v603
      %v759 = vpop.f32.mrb[0].mxu0
      %v760 = vadd.f32 %v462, %v759
      %v761 = vpop.f32.mrb[0].mxu0
      %v762 = vpop.f32.mrb[0].mxu0
      %v763 = vadd.f32 %v462, %v762
      %v764 = vpop.f32.mrb[0].mxu0
      %765 = vdwg.mxu0
      %v766 = vmax.f32 %v640, 0.0
      %v767 = vmax.f32 %v643, 0.0
      %v768 = vmax.f32 %v648, 0.0
      %v769 = vmax.f32 %v651, 0.0
      %v770 = vmax.f32 %v656, 0.0
      %v771 = vmax.f32 %v659, 0.0
      %v772 = vmax.f32 %v664, 0.0
      %v773 = vmax.f32 %v667, 0.0
      %v774 = vmax.f32 %v672, 0.0
      %v775 = vmax.f32 %v675, 0.0
      %v776 = vmax.f32 %v680, 0.0
      %v777 = vmax.f32 %v683, 0.0
      %v778 = vmax.f32 %v688, 0.0
      %v779 = vmax.f32 %v691, 0.0
      %v780 = vmax.f32 %v696, 0.0
      %v781 = vmax.f32 %v699, 0.0
      %v782 = vmax.f32 %v704, 0.0
      %v783 = vmax.f32 %v707, 0.0
      %v784 = vmax.f32 %v712, 0.0
      %v785 = vmax.f32 %v715, 0.0
      %v786 = vmax.f32 %v720, 0.0
      %v787 = vmax.f32 %v723, 0.0
      %v788 = vmax.f32 %v728, 0.0
      %v789 = vmax.f32 %v731, 0.0
      %v790 = vmax.f32 %v736, 0.0
      %v791 = vmax.f32 %v739, 0.0
      %v792 = vmax.f32 %v744, 0.0
      %v793 = vmax.f32 %v747, 0.0
      %v794 = vmax.f32 %v752, 0.0
      %v795 = vmax.f32 %v755, 0.0
      %v796 = vmax.f32 %v760, 0.0
      %v797 = vmax.f32 %v763, 0.0
      %v798 = vmin.f32 %v766, 6.0
      %v799 = vmin.f32 %v767, 6.0
      %v800 = vmin.f32 %v768, 6.0
      %v801 = vmin.f32 %v769, 6.0
      %v802 = vmin.f32 %v770, 6.0
      %v803 = vmin.f32 %v771, 6.0
      %v804 = vmin.f32 %v772, 6.0
      %v805 = vmin.f32 %v773, 6.0
      %v806 = vmin.f32 %v774, 6.0
      %v807 = vmin.f32 %v775, 6.0
      %v808 = vmin.f32 %v776, 6.0
      %v809 = vmin.f32 %v777, 6.0
      %v810 = vmin.f32 %v778, 6.0
      %v811 = vmin.f32 %v779, 6.0
      %v812 = vmin.f32 %v780, 6.0
      %v813 = vmin.f32 %v781, 6.0
      %v814 = vmin.f32 %v782, 6.0
      %v815 = vmin.f32 %v783, 6.0
      %v816 = vmin.f32 %v784, 6.0
      %v817 = vmin.f32 %v785, 6.0
      %v818 = vmin.f32 %v786, 6.0
      %v819 = vmin.f32 %v787, 6.0
      %v820 = vmin.f32 %v788, 6.0
      %v821 = vmin.f32 %v789, 6.0
      %v822 = vmin.f32 %v790, 6.0
      %v823 = vmin.f32 %v791, 6.0
      %v824 = vmin.f32 %v792, 6.0
      %v825 = vmin.f32 %v793, 6.0
      %v826 = vmin.f32 %v794, 6.0
      %v827 = vmin.f32 %v795, 6.0
      %v828 = vmin.f32 %v796, 6.0
      %v829 = vmin.f32 %v797, 6.0
      %v830 = vld [vmem:[#allocation2] sm:$0x1]
      %v831 = vsel %vm556, %v798, 0.0
      %v832 = vsel %vm556, %v799, 0.0
      %v833 = vadd.f32 %v831, %v832
      %v834 = vsel %vm556, %v800, 0.0
      %v835 = vadd.f32 %v833, %v834
      %v836 = vsel %vm556, %v801, 0.0
      %v837 = vadd.f32 %v835, %v836
      %v838 = vsel %vm556, %v802, 0.0
      %v839 = vadd.f32 %v837, %v838
      %v840 = vsel %vm556, %v803, 0.0
      %v841 = vadd.f32 %v839, %v840
      %v842 = vsel %vm556, %v804, 0.0
      %v843 = vadd.f32 %v841, %v842
      %v844 = vsel %vm556, %v805, 0.0
      %v845 = vadd.f32 %v843, %v844
      %v846 = vsel %vm556, %v806, 0.0
      %v847 = vadd.f32 %v845, %v846
      %v848 = vsel %vm556, %v807, 0.0
      %v849 = vadd.f32 %v847, %v848
      %v850 = vsel %vm556, %v808, 0.0
      %v851 = vadd.f32 %v849, %v850
      %v852 = vsel %vm556, %v809, 0.0
      %v853 = vadd.f32 %v851, %v852
      %v854 = vsel %vm556, %v810, 0.0
      %v855 = vadd.f32 %v853, %v854
      %v856 = vsel %vm556, %v811, 0.0
      %v857 = vadd.f32 %v855, %v856
      %v858 = vsel %vm556, %v812, 0.0
      %v859 = vadd.f32 %v857, %v858
      %v860 = vsel %vm556, %v813, 0.0
      %v861 = vadd.f32 %v859, %v860
      %v862 = vsel %vm556, %v814, 0.0
      %v863 = vadd.f32 %v861, %v862
      %v864 = vsel %vm556, %v815, 0.0
      %v865 = vadd.f32 %v863, %v864
      %v866 = vsel %vm556, %v816, 0.0
      %v867 = vadd.f32 %v865, %v866
      %v868 = vsel %vm556, %v817, 0.0
      %v869 = vadd.f32 %v867, %v868
      %v870 = vsel %vm556, %v818, 0.0
      %v871 = vadd.f32 %v869, %v870
      %v872 = vsel %vm556, %v819, 0.0
      %v873 = vadd.f32 %v871, %v872
      %v874 = vsel %vm556, %v820, 0.0
      %v875 = vadd.f32 %v873, %v874
      %v876 = vsel %vm556, %v821, 0.0
      %v877 = vadd.f32 %v875, %v876
      %v878 = vsel %vm556, %v822, 0.0
      %v879 = vadd.f32 %v877, %v878
      %v880 = vsel %vm556, %v823, 0.0
      %v881 = vadd.f32 %v879, %v880
      %v882 = vsel %vm556, %v824, 0.0
      %v883 = vadd.f32 %v881, %v882
      %v884 = vsel %vm556, %v825, 0.0
      %v885 = vadd.f32 %v883, %v884
      %v886 = vsel %vm556, %v826, 0.0
      %v887 = vadd.f32 %v885, %v886
      %v888 = vsel %vm556, %v827, 0.0
      %v889 = vadd.f32 %v887, %v888
      %v890 = vsel %vm556, %v828, 0.0
      %v891 = vadd.f32 %v889, %v890
      %v892 = vsel %vm556, %v829, 0.0
      %v893 = vadd.f32 %v891, %v892
      %v894 = vrot.slane %v893, 4
      %v895 = vadd.f32 %v893, %v894
      %v896 = vrot.slane %v895, 2
      %v897 = vadd.f32 %v895, %v896
      %v898 = vrot.slane %v897, 1
      %v899 = vadd.f32 %v897, %v898
      %v900 = vadd.f32 %v830, %v899
      %vm901 = vcmask 253952
      %902 = vst.msk [vmem:[#allocation2] sm:$0x1] %vm901, %v900
      // Predicated region
      $region69: #{critic_forward.1} parent=63 // pred_check
        %p903 = pneg %p415
      $region70: #{critic_forward.1} parent=63 // pred_check_branch
        %905 = sbr.rel (%p903) target = $region72
      $region71: #{critic_forward.1} parent=63 // pred_region
        %v906 = vld [vmem:[#allocation2] sm:$0x1]
        %v907 = vpack.c.bf16 %v906, %v906
        %v908 = vld [vmem:[%s4] sm:$0xff]
        %v909 = vld [vmem:[%s4 + $0x8] sm:$0xff]
        %v910 = vld [vmem:[%s4 + $0x10] sm:$0xff]
        %v911 = vld [vmem:[%s4 + $0x18] sm:$0xff]
        %v912 = vld [vmem:[%s4 + $0x20] sm:$0xff]
        %v913 = vld [vmem:[%s4 + $0x28] sm:$0xff]
        %v914 = vld [vmem:[%s4 + $0x30] sm:$0xff]
        %v915 = vld [vmem:[%s4 + $0x38] sm:$0xff]
        %v916 = vld [vmem:[%s4 + $0x40] sm:$0xff]
        %v917 = vld [vmem:[%s4 + $0x48] sm:$0xff]
        %v918 = vld [vmem:[%s4 + $0x50] sm:$0xff]
        %v919 = vld [vmem:[%s4 + $0x58] sm:$0xff]
        %v920 = vld [vmem:[%s4 + $0x60] sm:$0xff]
        %v921 = vld [vmem:[%s4 + $0x68] sm:$0xff]
        %v922 = vld [vmem:[%s4 + $0x70] sm:$0xff]
        %v923 = vld [vmem:[%s4 + $0x78] sm:$0xff]
        %v924 = vld [vmem:[%s4 + $0x80] sm:$0xff]
        %v925 = vld [vmem:[%s4 + $0x88] sm:$0xff]
        %v926 = vld [vmem:[%s4 + $0x90] sm:$0xff]
        %v927 = vld [vmem:[%s4 + $0x98] sm:$0xff]
        %v928 = vld [vmem:[%s5] sm:$0xff]
        %v929 = vld [vmem:[%s5 + $0x8] sm:$0x3]
        %v950 = vunpack.c.l.b16 %v908
        %v951 = vunpack.c.h.b16 %v908
        %v952 = vunpack.c.l.b16 %v909
        %v953 = vunpack.c.h.b16 %v909
        %v954 = vunpack.c.l.b16 %v910
        %v955 = vunpack.c.h.b16 %v910
        %v956 = vunpack.c.l.b16 %v911
        %v957 = vunpack.c.h.b16 %v911
        %v958 = vunpack.c.l.b16 %v912
        %v959 = vunpack.c.h.b16 %v912
        %v960 = vunpack.c.l.b16 %v913
        %v961 = vunpack.c.h.b16 %v913
        %v962 = vunpack.c.l.b16 %v914
        %v963 = vunpack.c.h.b16 %v914
        %v964 = vunpack.c.l.b16 %v915
        %v965 = vunpack.c.h.b16 %v915
        %v966 = vunpack.c.l.b16 %v916
        %v967 = vunpack.c.h.b16 %v916
        %v968 = vunpack.c.l.b16 %v917
        %v969 = vunpack.c.h.b16 %v917
        %v970 = vunpack.c.l.b16 %v918
        %v971 = vunpack.c.h.b16 %v918
        %v972 = vunpack.c.l.b16 %v919
        %v973 = vunpack.c.h.b16 %v919
        %v974 = vunpack.c.l.b16 %v920
        %v975 = vunpack.c.h.b16 %v920
        %v976 = vunpack.c.l.b16 %v921
        %v977 = vunpack.c.h.b16 %v921
        %v978 = vunpack.c.l.b16 %v922
        %v979 = vunpack.c.h.b16 %v922
        %v980 = vunpack.c.l.b16 %v923
        %v981 = vunpack.c.h.b16 %v923
        %v982 = vunpack.c.l.b16 %v924
        %v983 = vunpack.c.h.b16 %v924
        %v984 = vunpack.c.l.b16 %v925
        %v985 = vunpack.c.h.b16 %v925
        %v986 = vunpack.c.l.b16 %v926
        %v987 = vunpack.c.h.b16 %v926
        %v988 = vunpack.c.l.b16 %v927
        %v989 = vunpack.c.h.b16 %v927
        %v990 = vpack.c.b16 %v960, %v950
        %v991 = vpack.c.b16 %v961, %v951
        %v992 = vpack.c.b16 %v962, %v952
        %v993 = vpack.c.b16 %v963, %v953
        %v994 = vpack.c.b16 %v964, %v954
        %v995 = vpack.c.b16 %v965, %v955
        %v996 = vpack.c.b16 %v966, %v956
        %v997 = vpack.c.b16 %v967, %v957
        %v998 = vpack.c.b16 %v968, %v958
        %v999 = vpack.c.b16 %v969, %v959
        %v1000 = vpack.c.b16 %v980, %v970
        %v1001 = vpack.c.b16 %v981, %v971
        %v1002 = vpack.c.b16 %v982, %v972
        %v1003 = vpack.c.b16 %v983, %v973
        %v1004 = vpack.c.b16 %v984, %v974
        %v1005 = vpack.c.b16 %v985, %v975
        %v1006 = vpack.c.b16 %v986, %v976
        %v1007 = vpack.c.b16 %v987, %v977
        %v1008 = vpack.c.b16 %v988, %v978
        %v1009 = vpack.c.b16 %v989, %v979
        %v1032 = vlaneseq
        %v1033 = vshrl.u32 %v1032, 7
        %v1034 = vsub.s32 0, %v1033
        %v1035 = vrot.slane %v928, %v1034
        %v1036 = vlaneseq
        %v1037 = vshrl.u32 %v1036, 7
        %v1038 = vsub.s32 1, %v1037
        %v1039 = vrot.slane %v928, %v1038
        %v1040 = vlaneseq
        %v1041 = vshrl.u32 %v1040, 7
        %v1042 = vsub.s32 2, %v1041
        %v1043 = vrot.slane %v928, %v1042
        %v1044 = vlaneseq
        %v1045 = vshrl.u32 %v1044, 7
        %v1046 = vsub.s32 3, %v1045
        %v1047 = vrot.slane %v928, %v1046
        %v1048 = vlaneseq
        %v1049 = vshrl.u32 %v1048, 7
        %v1050 = vsub.s32 4, %v1049
        %v1051 = vrot.slane %v928, %v1050
        %v1052 = vlaneseq
        %v1053 = vshrl.u32 %v1052, 7
        %v1054 = vsub.s32 5, %v1053
        %v1055 = vrot.slane %v928, %v1054
        %v1056 = vlaneseq
        %v1057 = vshrl.u32 %v1056, 7
        %v1058 = vsub.s32 6, %v1057
        %v1059 = vrot.slane %v928, %v1058
        %v1060 = vlaneseq
        %v1061 = vshrl.u32 %v1060, 7
        %v1062 = vsub.s32 7, %v1061
        %v1063 = vrot.slane %v928, %v1062
        %v1064 = vlaneseq
        %v1065 = vshrl.u32 %v1064, 7
        %v1066 = vsub.s32 0, %v1065
        %v1067 = vrot.slane %v929, %v1066
        %v1068 = vlaneseq
        %v1069 = vshrl.u32 %v1068, 7
        %v1070 = vsub.s32 1, %v1069
        %v1071 = vrot.slane %v929, %v1070
        %v1083 = vsel %vm556, %v907, 0
        %1085 = vmatprep.subr.bf16.mxu0 %v991
        %1086 = vmatpush1.bf16.msra.mxu0 %v990
        %1087 = vmatprep.subr.bf16.mxu0 %v1001
        %1088 = vmatpush1.bf16.msra.mxu0 %v1000
        %1089 = vmatprep.subr.bf16.mxu0 0
        %1090 = vmatpush1.bf16.msra.mxu0 0
        %1091 = vmatprep.subr.bf16.mxu0 0
        %1092 = vmatpush1.bf16.msra.mxu0 0
        %1093 = vmatprep.subr.bf16.mxu0 0
        %1094 = vmatpush1.bf16.msra.mxu0 0
        %1095 = vmatprep.subr.bf16.mxu0 0
        %1096 = vmatpush1.bf16.msra.mxu0 0
        %1097 = vmatprep.subr.bf16.mxu0 0
        %1098 = vmatpush1.bf16.msra.mxu0 0
        %1099 = vmatprep.subr.bf16.mxu0 0
        %1100 = vmatpush1.bf16.msra.mxu0 0
        %1101 = vmatprep.subr.bf16.mxu0 0
        %1102 = vmatpush1.bf16.msra.mxu0 0
        %1103 = vmatprep.subr.bf16.mxu0 0
        %1104 = vmatpush1.bf16.msra.mxu0 0
        %1105 = vmatprep.subr.bf16.mxu0 0
        %1106 = vmatpush1.bf16.msra.mxu0 0
        %1107 = vmatprep.subr.bf16.mxu0 0
        %1108 = vmatpush1.bf16.msra.mxu0 0
        %1109 = vmatprep.subr.bf16.mxu0 0
        %1110 = vmatpush1.bf16.msra.mxu0 0
        %1111 = vmatprep.subr.bf16.mxu0 0
        %1112 = vmatpush1.bf16.msra.mxu0 0
        %1113 = vmatprep.subr.bf16.mxu0 0
        %1114 = vmatpush1.bf16.msra.mxu0 0
        %1115 = vmatprep.subr.bf16.mxu0 0
        %1116 = vmatpush1.bf16.msra.mxu0 0
        %1117 = vmatprep.mubr.bf16.mxu0 0
        %1118 = vmatmul.mubr.bf16.gmra.mrb[0].mxu0 %v1083
        %v1119 = vpop.f32.mrb[0].mxu0
        %v1120 = vadd.f32 %v1035, %v1119
        %v1121 = vpop.f32.mrb[0].mxu0
        %v1122 = vadd.f32 %v1039, %v1121
        %v1123 = vpop.f32.mrb[0].mxu0
        %v1124 = vpop.f32.mrb[0].mxu0
        %1125 = vdwg.mxu0
        %1126 = vmatprep.subr.bf16.mxu0 %v993
        %1127 = vmatpush1.bf16.msra.mxu0 %v992
        %1128 = vmatprep.subr.bf16.mxu0 %v1003
        %1129 = vmatpush1.bf16.msra.mxu0 %v1002
        %1130 = vmatprep.subr.bf16.mxu0 0
        %1131 = vmatpush1.bf16.msra.mxu0 0
        %1132 = vmatprep.subr.bf16.mxu0 0
        %1133 = vmatpush1.bf16.msra.mxu0 0
        %1134 = vmatprep.subr.bf16.mxu0 0
        %1135 = vmatpush1.bf16.msra.mxu0 0
        %1136 = vmatprep.subr.bf16.mxu0 0
        %1137 = vmatpush1.bf16.msra.mxu0 0
        %1138 = vmatprep.subr.bf16.mxu0 0
        %1139 = vmatpush1.bf16.msra.mxu0 0
        %1140 = vmatprep.subr.bf16.mxu0 0
        %1141 = vmatpush1.bf16.msra.mxu0 0
        %1142 = vmatprep.subr.bf16.mxu0 0
        %1143 = vmatpush1.bf16.msra.mxu0 0
        %1144 = vmatprep.subr.bf16.mxu0 0
        %1145 = vmatpush1.bf16.msra.mxu0 0
        %1146 = vmatprep.subr.bf16.mxu0 0
        %1147 = vmatpush1.bf16.msra.mxu0 0
        %1148 = vmatprep.subr.bf16.mxu0 0
        %1149 = vmatpush1.bf16.msra.mxu0 0
        %1150 = vmatprep.subr.bf16.mxu0 0
        %1151 = vmatpush1.bf16.msra.mxu0 0
        %1152 = vmatprep.subr.bf16.mxu0 0
        %1153 = vmatpush1.bf16.msra.mxu0 0
        %1154 = vmatprep.subr.bf16.mxu0 0
        %1155 = vmatpush1.bf16.msra.mxu0 0
        %1156 = vmatprep.subr.bf16.mxu0 0
        %1157 = vmatpush1.bf16.msra.mxu0 0
        %1158 = vmatprep.mubr.bf16.mxu0 0
        %1159 = vmatmul.mubr.bf16.gmra.mrb[0].mxu0 %v1083
        %v1160 = vpop.f32.mrb[0].mxu0
        %v1161 = vadd.f32 %v1043, %v1160
        %v1162 = vpop.f32.mrb[0].mxu0
        %v1163 = vadd.f32 %v1047, %v1162
        %v1164 = vpop.f32.mrb[0].mxu0
        %v1165 = vpop.f32.mrb[0].mxu0
        %1166 = vdwg.mxu0
        %1167 = vmatprep.subr.bf16.mxu0 %v995
        %1168 = vmatpush1.bf16.msra.mxu0 %v994
        %1169 = vmatprep.subr.bf16.mxu0 %v1005
        %1170 = vmatpush1.bf16.msra.mxu0 %v1004
        %1171 = vmatprep.subr.bf16.mxu0 0
        %1172 = vmatpush1.bf16.msra.mxu0 0
        %1173 = vmatprep.subr.bf16.mxu0 0
        %1174 = vmatpush1.bf16.msra.mxu0 0
        %1175 = vmatprep.subr.bf16.mxu0 0
        %1176 = vmatpush1.bf16.msra.mxu0 0
        %1177 = vmatprep.subr.bf16.mxu0 0
        %1178 = vmatpush1.bf16.msra.mxu0 0
        %1179 = vmatprep.subr.bf16.mxu0 0
        %1180 = vmatpush1.bf16.msra.mxu0 0
        %1181 = vmatprep.subr.bf16.mxu0 0
        %1182 = vmatpush1.bf16.msra.mxu0 0
        %1183 = vmatprep.subr.bf16.mxu0 0
        %1184 = vmatpush1.bf16.msra.mxu0 0
        %1185 = vmatprep.subr.bf16.mxu0 0
        %1186 = vmatpush1.bf16.msra.mxu0 0
        %1187 = vmatprep.subr.bf16.mxu0 0
        %1188 = vmatpush1.bf16.msra.mxu0 0
        %1189 = vmatprep.subr.bf16.mxu0 0
        %1190 = vmatpush1.bf16.msra.mxu0 0
        %1191 = vmatprep.subr.bf16.mxu0 0
        %1192 = vmatpush1.bf16.msra.mxu0 0
        %1193 = vmatprep.subr.bf16.mxu0 0
        %1194 = vmatpush1.bf16.msra.mxu0 0
        %1195 = vmatprep.subr.bf16.mxu0 0
        %1196 = vmatpush1.bf16.msra.mxu0 0
        %1197 = vmatprep.subr.bf16.mxu0 0
        %1198 = vmatpush1.bf16.msra.mxu0 0
        %1199 = vmatprep.mubr.bf16.mxu0 0
        %1200 = vmatmul.mubr.bf16.gmra.mrb[0].mxu0 %v1083
        %v1201 = vpop.f32.mrb[0].mxu0
        %v1202 = vadd.f32 %v1051, %v1201
        %v1203 = vpop.f32.mrb[0].mxu0
        %v1204 = vadd.f32 %v1055, %v1203
        %v1205 = vpop.f32.mrb[0].mxu0
        %v1206 = vpop.f32.mrb[0].mxu0
        %1207 = vdwg.mxu0
        %1208 = vmatprep.subr.bf16.mxu0 %v997
        %1209 = vmatpush1.bf16.msra.mxu0 %v996
        %1210 = vmatprep.subr.bf16.mxu0 %v1007
        %1211 = vmatpush1.bf16.msra.mxu0 %v1006
        %1212 = vmatprep.subr.bf16.mxu0 0
        %1213 = vmatpush1.bf16.msra.mxu0 0
        %1214 = vmatprep.subr.bf16.mxu0 0
        %1215 = vmatpush1.bf16.msra.mxu0 0
        %1216 = vmatprep.subr.bf16.mxu0 0
        %1217 = vmatpush1.bf16.msra.mxu0 0
        %1218 = vmatprep.subr.bf16.mxu0 0
        %1219 = vmatpush1.bf16.msra.mxu0 0
        %1220 = vmatprep.subr.bf16.mxu0 0
        %1221 = vmatpush1.bf16.msra.mxu0 0
        %1222 = vmatprep.subr.bf16.mxu0 0
        %1223 = vmatpush1.bf16.msra.mxu0 0
        %1224 = vmatprep.subr.bf16.mxu0 0
        %1225 = vmatpush1.bf16.msra.mxu0 0
        %1226 = vmatprep.subr.bf16.mxu0 0
        %1227 = vmatpush1.bf16.msra.mxu0 0
        %1228 = vmatprep.subr.bf16.mxu0 0
        %1229 = vmatpush1.bf16.msra.mxu0 0
        %1230 = vmatprep.subr.bf16.mxu0 0
        %1231 = vmatpush1.bf16.msra.mxu0 0
        %1232 = vmatprep.subr.bf16.mxu0 0
        %1233 = vmatpush1.bf16.msra.mxu0 0
        %1234 = vmatprep.subr.bf16.mxu0 0
        %1235 = vmatpush1.bf16.msra.mxu0 0
        %1236 = vmatprep.subr.bf16.mxu0 0
        %1237 = vmatpush1.bf16.msra.mxu0 0
        %1238 = vmatprep.subr.bf16.mxu0 0
        %1239 = vmatpush1.bf16.msra.mxu0 0
        %1240 = vmatprep.mubr.bf16.mxu0 0
        %1241 = vmatmul.mubr.bf16.gmra.mrb[0].mxu0 %v1083
        %v1242 = vpop.f32.mrb[0].mxu0
        %v1243 = vadd.f32 %v1059, %v1242
        %v1244 = vpop.f32.mrb[0].mxu0
        %v1245 = vadd.f32 %v1063, %v1244
        %v1246 = vpop.f32.mrb[0].mxu0
        %v1247 = vpop.f32.mrb[0].mxu0
        %1248 = vdwg.mxu0
        %1249 = vmatprep.subr.bf16.mxu0 %v999
        %1250 = vmatpush1.bf16.msra.mxu0 %v998
        %1251 = vmatprep.subr.bf16.mxu0 %v1009
        %1252 = vmatpush1.bf16.msra.mxu0 %v1008
        %1253 = vmatprep.subr.bf16.mxu0 0
        %1254 = vmatpush1.bf16.msra.mxu0 0
        %1255 = vmatprep.subr.bf16.mxu0 0
        %1256 = vmatpush1.bf16.msra.mxu0 0
        %1257 = vmatprep.subr.bf16.mxu0 0
        %1258 = vmatpush1.bf16.msra.mxu0 0
        %1259 = vmatprep.subr.bf16.mxu0 0
        %1260 = vmatpush1.bf16.msra.mxu0 0
        %1261 = vmatprep.subr.bf16.mxu0 0
        %1262 = vmatpush1.bf16.msra.mxu0 0
        %1263 = vmatprep.subr.bf16.mxu0 0
        %1264 = vmatpush1.bf16.msra.mxu0 0
        %1265 = vmatprep.subr.bf16.mxu0 0
        %1266 = vmatpush1.bf16.msra.mxu0 0
        %1267 = vmatprep.subr.bf16.mxu0 0
        %1268 = vmatpush1.bf16.msra.mxu0 0
        %1269 = vmatprep.subr.bf16.mxu0 0
        %1270 = vmatpush1.bf16.msra.mxu0 0
        %1271 = vmatprep.subr.bf16.mxu0 0
        %1272 = vmatpush1.bf16.msra.mxu0 0
        %1273 = vmatprep.subr.bf16.mxu0 0
        %1274 = vmatpush1.bf16.msra.mxu0 0
        %1275 = vmatprep.subr.bf16.mxu0 0
        %1276 = vmatpush1.bf16.msra.mxu0 0
        %1277 = vmatprep.subr.bf16.mxu0 0
        %1278 = vmatpush1.bf16.msra.mxu0 0
        %1279 = vmatprep.subr.bf16.mxu0 0
        %1280 = vmatpush1.bf16.msra.mxu0 0
        %1281 = vmatprep.mubr.bf16.mxu0 0
        %1282 = vmatmul.mubr.bf16.gmra.mrb[0].mxu0 %v1083
        %v1283 = vpop.f32.mrb[0].mxu0
        %v1284 = vadd.f32 %v1067, %v1283
        %v1285 = vpop.f32.mrb[0].mxu0
        %v1286 = vadd.f32 %v1071, %v1285
        %v1287 = vpop.f32.mrb[0].mxu0
        %v1288 = vpop.f32.mrb[0].mxu0
        %1289 = vdwg.mxu0
        %v1290 = vmax.f32 %v1120, 0.0
        %v1291 = vmax.f32 %v1122, 0.0
        %v1292 = vmax.f32 %v1161, 0.0
        %v1293 = vmax.f32 %v1163, 0.0
        %v1294 = vmax.f32 %v1202, 0.0
        %v1295 = vmax.f32 %v1204, 0.0
        %v1296 = vmax.f32 %v1243, 0.0
        %v1297 = vmax.f32 %v1245, 0.0
        %v1298 = vmax.f32 %v1284, 0.0
        %v1299 = vmax.f32 %v1286, 0.0
        %v1300 = vlaneseq
        %v1301 = vshrl.u32 %v1300, 7
        %v1302 = vstv %s27
        %vm1303 = vcmp.eq.s32.totalorder %v1301, %v1302
        %v1304 = vld [vmem:[%s1] sm:$0x3]
        %v1305 = vsel %vm1303, %v1304, 0.0
        %vm1306 = vcmask 25600
        %v1307 = vsel %vm1306, %v1305, 0.0
        %v1308 = vrot.slane %v1307, 4
        %v1309 = vadd.f32 %v1307, %v1308
        %v1310 = vrot.slane %v1309, 2
        %v1311 = vadd.f32 %v1309, %v1310
        %v1312 = vrot.slane %v1311, 1
        %v1313 = vadd.f32 %v1311, %v1312
        %v1314 = vpack.c.bf16 %v1290, %v1290
        %v1315 = vpack.c.bf16 %v1291, %v1291
        %v1316 = vpack.c.bf16 %v1292, %v1292
        %v1317 = vpack.c.bf16 %v1293, %v1293
        %v1318 = vpack.c.bf16 %v1294, %v1294
        %v1319 = vpack.c.bf16 %v1295, %v1295
        %v1320 = vpack.c.bf16 %v1296, %v1296
        %v1321 = vpack.c.bf16 %v1297, %v1297
        %v1322 = vpack.c.bf16 %v1298, %v1298
        %v1323 = vpack.c.bf16 %v1299, %v1299
        %v1324 = vld [vmem:[%s6] sm:$0xf]
        %v1325 = vld [vmem:[%s6 + $0x4] sm:$0xf]
        %v1326 = vld [vmem:[%s6 + $0x8] sm:$0xf]
        %v1327 = vld [vmem:[%s6 + $0xc] sm:$0xf]
        %v1328 = vld [vmem:[%s6 + $0x10] sm:$0xf]
        %v1329 = vld [vmem:[%s6 + $0x14] sm:$0xf]
        %v1330 = vld [vmem:[%s6 + $0x18] sm:$0xf]
        %v1331 = vld [vmem:[%s6 + $0x1c] sm:$0xf]
        %v1332 = vld [vmem:[%s6 + $0x20] sm:$0xf]
        %v1333 = vld [vmem:[%s6 + $0x24] sm:$0xf]
        %v1334 = vld [vmem:[%s6 + $0x28] sm:$0xf]
        %v1335 = vld [vmem:[%s6 + $0x2c] sm:$0xf]
        %v1336 = vld [vmem:[%s6 + $0x30] sm:$0xf]
        %v1337 = vld [vmem:[%s6 + $0x34] sm:$0xf]
        %v1338 = vld [vmem:[%s6 + $0x38] sm:$0xf]
        %v1339 = vld [vmem:[%s6 + $0x3c] sm:$0xf]
        %v1340 = vld [vmem:[%s6 + $0x40] sm:$0xf]
        %v1341 = vld [vmem:[%s6 + $0x44] sm:$0xf]
        %v1342 = vld [vmem:[%s6 + $0x48] sm:$0xf]
        %v1343 = vld [vmem:[%s6 + $0x4c] sm:$0xf]
        %v1344 = vld [vmem:[%s6 + $0x50] sm:$0xf]
        %v1345 = vld [vmem:[%s6 + $0x54] sm:$0xf]
        %v1346 = vld [vmem:[%s6 + $0x58] sm:$0xf]
        %v1347 = vld [vmem:[%s6 + $0x5c] sm:$0xf]
        %v1348 = vld [vmem:[%s6 + $0x60] sm:$0xf]
        %v1349 = vld [vmem:[%s6 + $0x64] sm:$0xf]
        %v1350 = vld [vmem:[%s6 + $0x68] sm:$0xf]
        %v1351 = vld [vmem:[%s6 + $0x6c] sm:$0xf]
        %v1352 = vld [vmem:[%s6 + $0x70] sm:$0xf]
        %v1353 = vld [vmem:[%s6 + $0x74] sm:$0xf]
        %v1354 = vld [vmem:[%s6 + $0x78] sm:$0xf]
        %v1355 = vld [vmem:[%s6 + $0x7c] sm:$0xf]
        %v1356 = vld [vmem:[%s6 + $0x80] sm:$0xf]
        %v1357 = vld [vmem:[%s6 + $0x84] sm:$0xf]
        %v1358 = vld [vmem:[%s6 + $0x88] sm:$0xf]
        %v1359 = vld [vmem:[%s6 + $0x8c] sm:$0xf]
        %v1360 = vld [vmem:[%s6 + $0x90] sm:$0xf]
        %v1361 = vld [vmem:[%s6 + $0x94] sm:$0xf]
        %v1362 = vld [vmem:[%s6 + $0x98] sm:$0xf]
        %v1363 = vld [vmem:[%s6 + $0x9c] sm:$0xf]
        %v1364 = vld [vmem:[%s6 + $0xa0] sm:$0xf]
        %v1365 = vld [vmem:[%s6 + $0xa4] sm:$0xf]
        %v1366 = vld [vmem:[%s6 + $0xa8] sm:$0xf]
        %v1367 = vld [vmem:[%s6 + $0xac] sm:$0xf]
        %v1368 = vld [vmem:[%s6 + $0xb0] sm:$0xf]
        %v1369 = vld [vmem:[%s6 + $0xb4] sm:$0xf]
        %v1370 = vld [vmem:[%s6 + $0xb8] sm:$0xf]
        %v1371 = vld [vmem:[%s6 + $0xbc] sm:$0xf]
        %v1372 = vld [vmem:[%s6 + $0xc0] sm:$0xf]
        %v1373 = vld [vmem:[%s6 + $0xc4] sm:$0xf]
        %v1374 = vld [vmem:[%s6 + $0xc8] sm:$0xf]
        %v1375 = vld [vmem:[%s6 + $0xcc] sm:$0xf]
        %v1376 = vld [vmem:[%s6 + $0xd0] sm:$0xf]
        %v1377 = vld [vmem:[%s6 + $0xd4] sm:$0xf]
        %v1378 = vld [vmem:[%s6 + $0xd8] sm:$0xf]
        %v1379 = vld [vmem:[%s6 + $0xdc] sm:$0xf]
        %v1380 = vld [vmem:[%s6 + $0xe0] sm:$0xf]
        %v1381 = vld [vmem:[%s6 + $0xe4] sm:$0xf]
        %v1382 = vld [vmem:[%s6 + $0xe8] sm:$0xf]
        %v1383 = vld [vmem:[%s6 + $0xec] sm:$0xf]
        %v1384 = vld [vmem:[%s6 + $0xf0] sm:$0xf]
        %v1385 = vld [vmem:[%s6 + $0xf4] sm:$0xf]
        %v1386 = vld [vmem:[%s6 + $0xf8] sm:$0xf]
        %v1387 = vld [vmem:[%s6 + $0xfc] sm:$0xf]
        %v1388 = vld [vmem:[%s6 + $0x100] sm:$0xf]
        %v1389 = vld [vmem:[%s6 + $0x104] sm:$0xf]
        %v1390 = vld [vmem:[%s6 + $0x108] sm:$0xf]
        %v1391 = vld [vmem:[%s6 + $0x10c] sm:$0xf]
        %v1392 = vld [vmem:[%s6 + $0x110] sm:$0xf]
        %v1393 = vld [vmem:[%s6 + $0x114] sm:$0xf]
        %v1394 = vld [vmem:[%s6 + $0x118] sm:$0xf]
        %v1395 = vld [vmem:[%s6 + $0x11c] sm:$0xf]
        %v1396 = vld [vmem:[%s6 + $0x120] sm:$0xf]
        %v1397 = vld [vmem:[%s6 + $0x124] sm:$0xf]
        %v1398 = vld [vmem:[%s6 + $0x128] sm:$0xf]
        %v1399 = vld [vmem:[%s6 + $0x12c] sm:$0xf]
        %v1400 = vld [vmem:[%s6 + $0x130] sm:$0xf]
        %v1401 = vld [vmem:[%s6 + $0x134] sm:$0xf]
        %v1402 = vld [vmem:[%s6 + $0x138] sm:$0xf]
        %v1403 = vld [vmem:[%s6 + $0x13c] sm:$0xf]
        %v1404 = vld [vmem:[%s6 + $0x140] sm:$0xf]
        %v1405 = vld [vmem:[%s6 + $0x144] sm:$0xf]
        %v1406 = vld [vmem:[%s6 + $0x148] sm:$0xf]
        %v1407 = vld [vmem:[%s6 + $0x14c] sm:$0xf]
        %v1408 = vld [vmem:[%s6 + $0x150] sm:$0xf]
        %v1409 = vld [vmem:[%s6 + $0x154] sm:$0xf]
        %v1410 = vld [vmem:[%s6 + $0x158] sm:$0xf]
        %v1411 = vld [vmem:[%s6 + $0x15c] sm:$0xf]
        %v1412 = vld [vmem:[%s6 + $0x160] sm:$0xf]
        %v1413 = vld [vmem:[%s6 + $0x164] sm:$0xf]
        %v1414 = vld [vmem:[%s6 + $0x168] sm:$0xf]
        %v1415 = vld [vmem:[%s6 + $0x16c] sm:$0xf]
        %v1416 = vld [vmem:[%s6 + $0x170] sm:$0xf]
        %v1417 = vld [vmem:[%s6 + $0x174] sm:$0xf]
        %v1418 = vld [vmem:[%s6 + $0x178] sm:$0xf]
        %v1419 = vld [vmem:[%s6 + $0x17c] sm:$0xf]
        %v1420 = vld [vmem:[%s6 + $0x180] sm:$0xf]
        %v1421 = vld [vmem:[%s6 + $0x184] sm:$0xf]
        %v1422 = vld [vmem:[%s6 + $0x188] sm:$0xf]
        %v1423 = vld [vmem:[%s6 + $0x18c] sm:$0xf]
        %v1424 = vld [vmem:[%s6 + $0x190] sm:$0xf]
        %v1425 = vld [vmem:[%s6 + $0x194] sm:$0xf]
        %v1426 = vld [vmem:[%s6 + $0x198] sm:$0xf]
        %v1427 = vld [vmem:[%s6 + $0x19c] sm:$0xf]
        %v1428 = vld [vmem:[%s6 + $0x1a0] sm:$0xf]
        %v1429 = vld [vmem:[%s6 + $0x1a4] sm:$0xf]
        %v1430 = vld [vmem:[%s6 + $0x1a8] sm:$0xf]
        %v1431 = vld [vmem:[%s6 + $0x1ac] sm:$0xf]
        %v1432 = vld [vmem:[%s6 + $0x1b0] sm:$0xf]
        %v1433 = vld [vmem:[%s6 + $0x1b4] sm:$0xf]
        %v1434 = vld [vmem:[%s6 + $0x1b8] sm:$0xf]
        %v1435 = vld [vmem:[%s6 + $0x1bc] sm:$0xf]
        %v1436 = vld [vmem:[%s6 + $0x1c0] sm:$0xf]
        %v1437 = vld [vmem:[%s6 + $0x1c4] sm:$0xf]
        %v1438 = vld [vmem:[%s6 + $0x1c8] sm:$0xf]
        %v1439 = vld [vmem:[%s6 + $0x1cc] sm:$0xf]
        %v1440 = vld [vmem:[%s6 + $0x1d0] sm:$0xf]
        %v1441 = vld [vmem:[%s6 + $0x1d4] sm:$0xf]
        %v1442 = vld [vmem:[%s6 + $0x1d8] sm:$0xf]
        %v1443 = vld [vmem:[%s6 + $0x1dc] sm:$0xf]
        %v1444 = vld [vmem:[%s6 + $0x1e0] sm:$0xf]
        %v1445 = vld [vmem:[%s6 + $0x1e4] sm:$0xf]
        %v1446 = vld [vmem:[%s6 + $0x1e8] sm:$0xf]
        %v1447 = vld [vmem:[%s6 + $0x1ec] sm:$0xf]
        %v1448 = vld [vmem:[%s6 + $0x1f0] sm:$0xf]
        %v1449 = vld [vmem:[%s6 + $0x1f4] sm:$0xf]
        %v1450 = vld [vmem:[%s6 + $0x1f8] sm:$0xf]
        %v1451 = vld [vmem:[%s6 + $0x1fc] sm:$0xf]
        %v1452 = vld [vmem:[%s6 + $0x200] sm:$0xf]
        %v1453 = vld [vmem:[%s6 + $0x204] sm:$0xf]
        %v1454 = vld [vmem:[%s6 + $0x208] sm:$0xf]
        %v1455 = vld [vmem:[%s6 + $0x20c] sm:$0xf]
        %v1456 = vld [vmem:[%s6 + $0x210] sm:$0xf]
        %v1457 = vld [vmem:[%s6 + $0x214] sm:$0xf]
        %v1458 = vld [vmem:[%s6 + $0x218] sm:$0xf]
        %v1459 = vld [vmem:[%s6 + $0x21c] sm:$0xf]
        %v1460 = vld [vmem:[%s6 + $0x220] sm:$0xf]
        %v1461 = vld [vmem:[%s6 + $0x224] sm:$0xf]
        %v1462 = vld [vmem:[%s6 + $0x228] sm:$0xf]
        %v1463 = vld [vmem:[%s6 + $0x22c] sm:$0xf]
        %v1464 = vld [vmem:[%s6 + $0x230] sm:$0xf]
        %v1465 = vld [vmem:[%s6 + $0x234] sm:$0xf]
        %v1466 = vld [vmem:[%s6 + $0x238] sm:$0xf]
        %v1467 = vld [vmem:[%s6 + $0x23c] sm:$0xf]
        %v1468 = vld [vmem:[%s6 + $0x240] sm:$0xf]
        %v1469 = vld [vmem:[%s6 + $0x244] sm:$0xf]
        %v1470 = vld [vmem:[%s6 + $0x248] sm:$0xf]
        %v1471 = vld [vmem:[%s6 + $0x24c] sm:$0xf]
        %v1472 = vld [vmem:[%s6 + $0x250] sm:$0xf]
        %v1473 = vld [vmem:[%s6 + $0x254] sm:$0xf]
        %v1474 = vld [vmem:[%s6 + $0x258] sm:$0xf]
        %v1475 = vld [vmem:[%s6 + $0x25c] sm:$0xf]
        %v1476 = vld [vmem:[%s6 + $0x260] sm:$0xf]
        %v1477 = vld [vmem:[%s6 + $0x264] sm:$0xf]
        %v1478 = vld [vmem:[%s6 + $0x268] sm:$0xf]
        %v1479 = vld [vmem:[%s6 + $0x26c] sm:$0xf]
        %v1480 = vld [vmem:[%s6 + $0x270] sm:$0xf]
        %v1481 = vld [vmem:[%s6 + $0x274] sm:$0xf]
        %v1482 = vld [vmem:[%s6 + $0x278] sm:$0xf]
        %v1483 = vld [vmem:[%s6 + $0x27c] sm:$0xf]
        %v1484 = vld [vmem:[%s7] sm:$0xf]
        %vm1485 = vcmask 31744
        %v1487 = vsel %vm1485, %v1313, 0
        %vm1489 = vcmask 1043456
        %v1491 = vsel %vm1489, %v1484, 0
        %1493 = vmatprep.subr.mxu0 0.0
        %1494 = vmatpush1.msra.mxu0 %v1491
        %1495 = vmatprep.subr.mxu0 0.0
        %1496 = vmatpush1.msra.mxu0 0.0
        %1497 = vmatprep.subr.mxu0 0.0
        %1498 = vmatpush1.msra.mxu0 0.0
        %1499 = vmatprep.subr.mxu0 0.0
        %1500 = vmatpush1.msra.mxu0 0.0
        %1501 = vmatprep.subr.mxu0 0.0
        %1502 = vmatpush1.msra.mxu0 0.0
        %1503 = vmatprep.subr.mxu0 0.0
        %1504 = vmatpush1.msra.mxu0 0.0
        %1505 = vmatprep.subr.mxu0 0.0
        %1506 = vmatpush1.msra.mxu0 0.0
        %1507 = vmatprep.subr.mxu0 0.0
        %1508 = vmatpush1.msra.mxu0 0.0
        %1509 = vmatprep.subr.mxu0 0.0
        %1510 = vmatpush1.msra.mxu0 0.0
        %1511 = vmatprep.subr.mxu0 0.0
        %1512 = vmatpush1.msra.mxu0 0.0
        %1513 = vmatprep.subr.mxu0 0.0
        %1514 = vmatpush1.msra.mxu0 0.0
        %1515 = vmatprep.subr.mxu0 0.0
        %1516 = vmatpush1.msra.mxu0 0.0
        %1517 = vmatprep.subr.mxu0 0.0
        %1518 = vmatpush1.msra.mxu0 0.0
        %1519 = vmatprep.subr.mxu0 0.0
        %1520 = vmatpush1.msra.mxu0 0.0
        %1521 = vmatprep.subr.mxu0 0.0
        %1522 = vmatpush1.msra.mxu0 0.0
        %1523 = vmatprep.subr.mxu0 0.0
        %1524 = vmatpush1.msra.mxu0 0.0
        %1525 = vmatprep.subr.mxu0 0.0
        %1526 = vmatpush1.msra.mxu0 0.0
        %1527 = vmatprep.subr.mxu0 0.0
        %1528 = vmatpush1.msra.mxu0 0.0
        %1529 = vmatprep.subr.mxu0 0.0
        %1530 = vmatpush1.msra.mxu0 0.0
        %1531 = vmatprep.subr.mxu0 0.0
        %1532 = vmatpush1.msra.mxu0 0.0
        %1533 = vmatprep.subr.mxu0 0.0
        %1534 = vmatpush1.msra.mxu0 0.0
        %1535 = vmatprep.subr.mxu0 0.0
        %1536 = vmatpush1.msra.mxu0 0.0
        %1537 = vmatprep.subr.mxu0 0.0
        %1538 = vmatpush1.msra.mxu0 0.0
        %1539 = vmatprep.subr.mxu0 0.0
        %1540 = vmatpush1.msra.mxu0 0.0
        %1541 = vmatprep.subr.mxu0 0.0
        %1542 = vmatpush1.msra.mxu0 0.0
        %1543 = vmatprep.subr.mxu0 0.0
        %1544 = vmatpush1.msra.mxu0 0.0
        %1545 = vmatprep.subr.mxu0 0.0
        %1546 = vmatpush1.msra.mxu0 0.0
        %1547 = vmatprep.subr.mxu0 0.0
        %1548 = vmatpush1.msra.mxu0 0.0
        %1549 = vmatprep.subr.mxu0 0.0
        %1550 = vmatpush1.msra.mxu0 0.0
        %1551 = vmatprep.subr.mxu0 0.0
        %1552 = vmatpush1.msra.mxu0 0.0
        %1553 = vmatprep.subr.mxu0 0.0
        %1554 = vmatpush1.msra.mxu0 0.0
        %1555 = vmatprep.subr.mxu0 0.0
        %1556 = vmatpush1.msra.mxu0 0.0
        %1557 = vmatprep.mubr.f32.mxu0 0.0
        %1558 = vmatmul.mubr.f32.gmra.mrb[0].mxu0 %v1487
        %v1559 = vpop.f32.mrb[0].mxu0
        %v1560 = vadd.f32 0.0, %v1559
        %v1561 = vpop.f32.mrb[0].mxu0
        %1562 = vdwg.mxu0
        %v1723 = vunpack.c.l.b16 %v1324
        %v1724 = vunpack.c.l.b16 %v1325
        %v1725 = vunpack.c.l.b16 %v1326
        %v1726 = vunpack.c.l.b16 %v1327
        %v1727 = vunpack.c.l.b16 %v1328
        %v1728 = vunpack.c.l.b16 %v1329
        %v1729 = vunpack.c.l.b16 %v1330
        %v1730 = vunpack.c.l.b16 %v1331
        %v1731 = vunpack.c.l.b16 %v1332
        %v1732 = vunpack.c.l.b16 %v1333
        %v1733 = vunpack.c.l.b16 %v1334
        %v1734 = vunpack.c.l.b16 %v1335
        %v1735 = vunpack.c.l.b16 %v1336
        %v1736 = vunpack.c.l.b16 %v1337
        %v1737 = vunpack.c.l.b16 %v1338
        %v1738 = vunpack.c.l.b16 %v1339
        %v1739 = vunpack.c.l.b16 %v1340
        %v1740 = vunpack.c.l.b16 %v1341
        %v1741 = vunpack.c.l.b16 %v1342
        %v1742 = vunpack.c.l.b16 %v1343
        %v1743 = vunpack.c.l.b16 %v1344
        %v1744 = vunpack.c.l.b16 %v1345
        %v1745 = vunpack.c.l.b16 %v1346
        %v1746 = vunpack.c.l.b16 %v1347
        %v1747 = vunpack.c.l.b16 %v1348
        %v1748 = vunpack.c.l.b16 %v1349
        %v1749 = vunpack.c.l.b16 %v1350
        %v1750 = vunpack.c.l.b16 %v1351
        %v1751 = vunpack.c.l.b16 %v1352
        %v1752 = vunpack.c.l.b16 %v1353
        %v1753 = vunpack.c.l.b16 %v1354
        %v1754 = vunpack.c.l.b16 %v1355
        %v1755 = vunpack.c.l.b16 %v1356
        %v1756 = vunpack.c.l.b16 %v1357
        %v1757 = vunpack.c.l.b16 %v1358
        %v1758 = vunpack.c.l.b16 %v1359
        %v1759 = vunpack.c.l.b16 %v1360
        %v1760 = vunpack.c.l.b16 %v1361
        %v1761 = vunpack.c.l.b16 %v1362
        %v1762 = vunpack.c.l.b16 %v1363
        %v1763 = vunpack.c.l.b16 %v1364
        %v1764 = vunpack.c.l.b16 %v1365
        %v1765 = vunpack.c.l.b16 %v1366
        %v1766 = vunpack.c.l.b16 %v1367
        %v1767 = vunpack.c.l.b16 %v1368
        %v1768 = vunpack.c.l.b16 %v1369
        %v1769 = vunpack.c.l.b16 %v1370
        %v1770 = vunpack.c.l.b16 %v1371
        %v1771 = vunpack.c.l.b16 %v1372
        %v1772 = vunpack.c.l.b16 %v1373
        %v1773 = vunpack.c.l.b16 %v1374
        %v1774 = vunpack.c.l.b16 %v1375
        %v1775 = vunpack.c.l.b16 %v1376
        %v1776 = vunpack.c.l.b16 %v1377
        %v1777 = vunpack.c.l.b16 %v1378
        %v1778 = vunpack.c.l.b16 %v1379
        %v1779 = vunpack.c.l.b16 %v1380
        %v1780 = vunpack.c.l.b16 %v1381
        %v1781 = vunpack.c.l.b16 %v1382
        %v1782 = vunpack.c.l.b16 %v1383
        %v1783 = vunpack.c.l.b16 %v1384
        %v1784 = vunpack.c.l.b16 %v1385
        %v1785 = vunpack.c.l.b16 %v1386
        %v1786 = vunpack.c.l.b16 %v1387
        %v1787 = vunpack.c.l.b16 %v1388
        %v1788 = vunpack.c.l.b16 %v1389
        %v1789 = vunpack.c.l.b16 %v1390
        %v1790 = vunpack.c.l.b16 %v1391
        %v1791 = vunpack.c.l.b16 %v1392
        %v1792 = vunpack.c.l.b16 %v1393
        %v1793 = vunpack.c.l.b16 %v1394
        %v1794 = vunpack.c.l.b16 %v1395
        %v1795 = vunpack.c.l.b16 %v1396
        %v1796 = vunpack.c.l.b16 %v1397
        %v1797 = vunpack.c.l.b16 %v1398
        %v1798 = vunpack.c.l.b16 %v1399
        %v1799 = vunpack.c.l.b16 %v1400
        %v1800 = vunpack.c.l.b16 %v1401
        %v1801 = vunpack.c.l.b16 %v1402
        %v1802 = vunpack.c.l.b16 %v1403
        %v1803 = vunpack.c.l.b16 %v1404
        %v1804 = vunpack.c.l.b16 %v1405
        %v1805 = vunpack.c.l.b16 %v1406
        %v1806 = vunpack.c.l.b16 %v1407
        %v1807 = vunpack.c.l.b16 %v1408
        %v1808 = vunpack.c.l.b16 %v1409
        %v1809 = vunpack.c.l.b16 %v1410
        %v1810 = vunpack.c.l.b16 %v1411
        %v1811 = vunpack.c.l.b16 %v1412
        %v1812 = vunpack.c.l.b16 %v1413
        %v1813 = vunpack.c.l.b16 %v1414
        %v1814 = vunpack.c.l.b16 %v1415
        %v1815 = vunpack.c.l.b16 %v1416
        %v1816 = vunpack.c.l.b16 %v1417
        %v1817 = vunpack.c.l.b16 %v1418
        %v1818 = vunpack.c.l.b16 %v1419
        %v1819 = vunpack.c.l.b16 %v1420
        %v1820 = vunpack.c.l.b16 %v1421
        %v1821 = vunpack.c.l.b16 %v1422
        %v1822 = vunpack.c.l.b16 %v1423
        %v1823 = vunpack.c.l.b16 %v1424
        %v1824 = vunpack.c.l.b16 %v1425
        %v1825 = vunpack.c.l.b16 %v1426
        %v1826 = vunpack.c.l.b16 %v1427
        %v1827 = vunpack.c.l.b16 %v1428
        %v1828 = vunpack.c.l.b16 %v1429
        %v1829 = vunpack.c.l.b16 %v1430
        %v1830 = vunpack.c.l.b16 %v1431
        %v1831 = vunpack.c.l.b16 %v1432
        %v1832 = vunpack.c.l.b16 %v1433
        %v1833 = vunpack.c.l.b16 %v1434
        %v1834 = vunpack.c.l.b16 %v1435
        %v1835 = vunpack.c.l.b16 %v1436
        %v1836 = vunpack.c.l.b16 %v1437
        %v1837 = vunpack.c.l.b16 %v1438
        %v1838 = vunpack.c.l.b16 %v1439
        %v1839 = vunpack.c.l.b16 %v1440
        %v1840 = vunpack.c.l.b16 %v1441
        %v1841 = vunpack.c.l.b16 %v1442
        %v1842 = vunpack.c.l.b16 %v1443
        %v1843 = vunpack.c.l.b16 %v1444
        %v1844 = vunpack.c.l.b16 %v1445
        %v1845 = vunpack.c.l.b16 %v1446
        %v1846 = vunpack.c.l.b16 %v1447
        %v1847 = vunpack.c.l.b16 %v1448
        %v1848 = vunpack.c.l.b16 %v1449
        %v1849 = vunpack.c.l.b16 %v1450
        %v1850 = vunpack.c.l.b16 %v1451
        %v1851 = vunpack.c.l.b16 %v1452
        %v1852 = vunpack.c.l.b16 %v1453
        %v1853 = vunpack.c.l.b16 %v1454
        %v1854 = vunpack.c.l.b16 %v1455
        %v1855 = vunpack.c.l.b16 %v1456
        %v1856 = vunpack.c.l.b16 %v1457
        %v1857 = vunpack.c.l.b16 %v1458
        %v1858 = vunpack.c.l.b16 %v1459
        %v1859 = vunpack.c.l.b16 %v1460
        %v1860 = vunpack.c.l.b16 %v1461
        %v1861 = vunpack.c.l.b16 %v1462
        %v1862 = vunpack.c.l.b16 %v1463
        %v1863 = vunpack.c.l.b16 %v1464
        %v1864 = vunpack.c.l.b16 %v1465
        %v1865 = vunpack.c.l.b16 %v1466
        %v1866 = vunpack.c.l.b16 %v1467
        %v1867 = vunpack.c.l.b16 %v1468
        %v1868 = vunpack.c.l.b16 %v1469
        %v1869 = vunpack.c.l.b16 %v1470
        %v1870 = vunpack.c.l.b16 %v1471
        %v1871 = vunpack.c.l.b16 %v1472
        %v1872 = vunpack.c.l.b16 %v1473
        %v1873 = vunpack.c.l.b16 %v1474
        %v1874 = vunpack.c.l.b16 %v1475
        %v1875 = vunpack.c.l.b16 %v1476
        %v1876 = vunpack.c.l.b16 %v1477
        %v1877 = vunpack.c.l.b16 %v1478
        %v1878 = vunpack.c.l.b16 %v1479
        %v1879 = vunpack.c.l.b16 %v1480
        %v1880 = vunpack.c.l.b16 %v1481
        %v1881 = vunpack.c.l.b16 %v1482
        %v1882 = vunpack.c.l.b16 %v1483
        %v1883 = vpack.c.b16 %v1724, %v1723
        %v1884 = vpack.c.b16 %v1726, %v1725
        %v1885 = vpack.c.b16 %v1728, %v1727
        %v1886 = vpack.c.b16 %v1730, %v1729
        %v1887 = vpack.c.b16 %v1732, %v1731
        %v1888 = vpack.c.b16 %v1734, %v1733
        %v1889 = vpack.c.b16 %v1736, %v1735
        %v1890 = vpack.c.b16 %v1738, %v1737
        %v1891 = vpack.c.b16 %v1740, %v1739
        %v1892 = vpack.c.b16 %v1742, %v1741
        %v1893 = vpack.c.b16 %v1744, %v1743
        %v1894 = vpack.c.b16 %v1746, %v1745
        %v1895 = vpack.c.b16 %v1748, %v1747
        %v1896 = vpack.c.b16 %v1750, %v1749
        %v1897 = vpack.c.b16 %v1752, %v1751
        %v1898 = vpack.c.b16 %v1754, %v1753
        %v1899 = vpack.c.b16 %v1756, %v1755
        %v1900 = vpack.c.b16 %v1758, %v1757
        %v1901 = vpack.c.b16 %v1760, %v1759
        %v1902 = vpack.c.b16 %v1762, %v1761
        %v1903 = vpack.c.b16 %v1764, %v1763
        %v1904 = vpack.c.b16 %v1766, %v1765
        %v1905 = vpack.c.b16 %v1768, %v1767
        %v1906 = vpack.c.b16 %v1770, %v1769
        %v1907 = vpack.c.b16 %v1772, %v1771
        %v1908 = vpack.c.b16 %v1774, %v1773
        %v1909 = vpack.c.b16 %v1776, %v1775
        %v1910 = vpack.c.b16 %v1778, %v1777
        %v1911 = vpack.c.b16 %v1780, %v1779
        %v1912 = vpack.c.b16 %v1782, %v1781
        %v1913 = vpack.c.b16 %v1784, %v1783
        %v1914 = vpack.c.b16 %v1786, %v1785
        %v1915 = vpack.c.b16 %v1788, %v1787
        %v1916 = vpack.c.b16 %v1790, %v1789
        %v1917 = vpack.c.b16 %v1792, %v1791
        %v1918 = vpack.c.b16 %v1794, %v1793
        %v1919 = vpack.c.b16 %v1796, %v1795
        %v1920 = vpack.c.b16 %v1798, %v1797
        %v1921 = vpack.c.b16 %v1800, %v1799
        %v1922 = vpack.c.b16 %v1802, %v1801
        %v1923 = vpack.c.b16 %v1804, %v1803
        %v1924 = vpack.c.b16 %v1806, %v1805
        %v1925 = vpack.c.b16 %v1808, %v1807
        %v1926 = vpack.c.b16 %v1810, %v1809
        %v1927 = vpack.c.b16 %v1812, %v1811
        %v1928 = vpack.c.b16 %v1814, %v1813
        %v1929 = vpack.c.b16 %v1816, %v1815
        %v1930 = vpack.c.b16 %v1818, %v1817
        %v1931 = vpack.c.b16 %v1820, %v1819
        %v1932 = vpack.c.b16 %v1822, %v1821
        %v1933 = vpack.c.b16 %v1824, %v1823
        %v1934 = vpack.c.b16 %v1826, %v1825
        %v1935 = vpack.c.b16 %v1828, %v1827
        %v1936 = vpack.c.b16 %v1830, %v1829
        %v1937 = vpack.c.b16 %v1832, %v1831
        %v1938 = vpack.c.b16 %v1834, %v1833
        %v1939 = vpack.c.b16 %v1836, %v1835
        %v1940 = vpack.c.b16 %v1838, %v1837
        %v1941 = vpack.c.b16 %v1840, %v1839
        %v1942 = vpack.c.b16 %v1842, %v1841
        %v1943 = vpack.c.b16 %v1844, %v1843
        %v1944 = vpack.c.b16 %v1846, %v1845
        %v1945 = vpack.c.b16 %v1848, %v1847
        %v1946 = vpack.c.b16 %v1850, %v1849
        %v1947 = vpack.c.b16 %v1852, %v1851
        %v1948 = vpack.c.b16 %v1854, %v1853
        %v1949 = vpack.c.b16 %v1856, %v1855
        %v1950 = vpack.c.b16 %v1858, %v1857
        %v1951 = vpack.c.b16 %v1860, %v1859
        %v1952 = vpack.c.b16 %v1862, %v1861
        %v1953 = vpack.c.b16 %v1864, %v1863
        %v1954 = vpack.c.b16 %v1866, %v1865
        %v1955 = vpack.c.b16 %v1868, %v1867
        %v1956 = vpack.c.b16 %v1870, %v1869
        %v1957 = vpack.c.b16 %v1872, %v1871
        %v1958 = vpack.c.b16 %v1874, %v1873
        %v1959 = vpack.c.b16 %v1876, %v1875
        %v1960 = vpack.c.b16 %v1878, %v1877
        %v1961 = vpack.c.b16 %v1880, %v1879
        %v1962 = vpack.c.b16 %v1882, %v1881
        %2043 = vmatprep.subr.bf16.mxu0 0
        %2044 = vmatpush1.bf16.msra.mxu0 %v1883
        %2045 = vmatprep.subr.bf16.mxu0 0
        %2046 = vmatpush1.bf16.msra.mxu0 %v1884
        %2047 = vmatprep.subr.bf16.mxu0 0
        %2048 = vmatpush1.bf16.msra.mxu0 %v1885
        %2049 = vmatprep.subr.bf16.mxu0 0
        %2050 = vmatpush1.bf16.msra.mxu0 %v1886
        %2051 = vmatprep.subr.bf16.mxu0 0
        %2052 = vmatpush1.bf16.msra.mxu0 %v1887
        %2053 = vmatprep.subr.bf16.mxu0 0
        %2054 = vmatpush1.bf16.msra.mxu0 %v1888
        %2055 = vmatprep.subr.bf16.mxu0 0
        %2056 = vmatpush1.bf16.msra.mxu0 %v1889
        %2057 = vmatprep.subr.bf16.mxu0 0
        %2058 = vmatpush1.bf16.msra.mxu0 %v1890
        %2059 = vmatprep.subr.bf16.mxu0 0
        %2060 = vmatpush1.bf16.msra.mxu0 %v1891
        %2061 = vmatprep.subr.bf16.mxu0 0
        %2062 = vmatpush1.bf16.msra.mxu0 %v1892
        %2063 = vmatprep.subr.bf16.mxu0 0
        %2064 = vmatpush1.bf16.msra.mxu0 %v1893
        %2065 = vmatprep.subr.bf16.mxu0 0
        %2066 = vmatpush1.bf16.msra.mxu0 %v1894
        %2067 = vmatprep.subr.bf16.mxu0 0
        %2068 = vmatpush1.bf16.msra.mxu0 %v1895
        %2069 = vmatprep.subr.bf16.mxu0 0
        %2070 = vmatpush1.bf16.msra.mxu0 %v1896
        %2071 = vmatprep.subr.bf16.mxu0 0
        %2072 = vmatpush1.bf16.msra.mxu0 %v1897
        %2073 = vmatprep.subr.bf16.mxu0 0
        %2074 = vmatpush1.bf16.msra.mxu0 %v1898
        %2075 = vmatprep.mubr.bf16.mxu0 %v1315
        %2076 = vmatmul.mubr.bf16.gmra.mrb[0].mxu0 %v1314
        %v2077 = vpop.f32.mrb[0].mxu0
        %v2078 = vadd.f32 %v1560, %v2077
        %v2079 = vpop.f32.mrb[0].mxu0
        %v2080 = vpop.f32.mrb[0].mxu0
        %v2081 = vpop.f32.mrb[0].mxu0
        %2082 = vdwg.mxu0
        %2083 = vmatprep.subr.bf16.mxu0 0
        %2084 = vmatpush1.bf16.msra.mxu0 %v1899
        %2085 = vmatprep.subr.bf16.mxu0 0
        %2086 = vmatpush1.bf16.msra.mxu0 %v1900
        %2087 = vmatprep.subr.bf16.mxu0 0
        %2088 = vmatpush1.bf16.msra.mxu0 %v1901
        %2089 = vmatprep.subr.bf16.mxu0 0
        %2090 = vmatpush1.bf16.msra.mxu0 %v1902
        %2091 = vmatprep.subr.bf16.mxu0 0
        %2092 = vmatpush1.bf16.msra.mxu0 %v1903
        %2093 = vmatprep.subr.bf16.mxu0 0
        %2094 = vmatpush1.bf16.msra.mxu0 %v1904
        %2095 = vmatprep.subr.bf16.mxu0 0
        %2096 = vmatpush1.bf16.msra.mxu0 %v1905
        %2097 = vmatprep.subr.bf16.mxu0 0
        %2098 = vmatpush1.bf16.msra.mxu0 %v1906
        %2099 = vmatprep.subr.bf16.mxu0 0
        %2100 = vmatpush1.bf16.msra.mxu0 %v1907
        %2101 = vmatprep.subr.bf16.mxu0 0
        %2102 = vmatpush1.bf16.msra.mxu0 %v1908
        %2103 = vmatprep.subr.bf16.mxu0 0
        %2104 = vmatpush1.bf16.msra.mxu0 %v1909
        %2105 = vmatprep.subr.bf16.mxu0 0
        %2106 = vmatpush1.bf16.msra.mxu0 %v1910
        %2107 = vmatprep.subr.bf16.mxu0 0
        %2108 = vmatpush1.bf16.msra.mxu0 %v1911
        %2109 = vmatprep.subr.bf16.mxu0 0
        %2110 = vmatpush1.bf16.msra.mxu0 %v1912
        %2111 = vmatprep.subr.bf16.mxu0 0
        %2112 = vmatpush1.bf16.msra.mxu0 %v1913
        %2113 = vmatprep.subr.bf16.mxu0 0
        %2114 = vmatpush1.bf16.msra.mxu0 %v1914
        %2115 = vmatprep.mubr.bf16.mxu0 %v1317
        %2116 = vmatmul.mubr.bf16.gmra.mrb[0].mxu0 %v1316
        %v2117 = vpop.f32.mrb[0].mxu0
        %v2118 = vadd.f32 %v2078, %v2117
        %v2119 = vpop.f32.mrb[0].mxu0
        %v2120 = vpop.f32.mrb[0].mxu0
        %v2121 = vpop.f32.mrb[0].mxu0
        %2122 = vdwg.mxu0
        %2123 = vmatprep.subr.bf16.mxu0 0
        %2124 = vmatpush1.bf16.msra.mxu0 %v1915
        %2125 = vmatprep.subr.bf16.mxu0 0
        %2126 = vmatpush1.bf16.msra.mxu0 %v1916
        %2127 = vmatprep.subr.bf16.mxu0 0
        %2128 = vmatpush1.bf16.msra.mxu0 %v1917
        %2129 = vmatprep.subr.bf16.mxu0 0
        %2130 = vmatpush1.bf16.msra.mxu0 %v1918
        %2131 = vmatprep.subr.bf16.mxu0 0
        %2132 = vmatpush1.bf16.msra.mxu0 %v1919
        %2133 = vmatprep.subr.bf16.mxu0 0
        %2134 = vmatpush1.bf16.msra.mxu0 %v1920
        %2135 = vmatprep.subr.bf16.mxu0 0
        %2136 = vmatpush1.bf16.msra.mxu0 %v1921
        %2137 = vmatprep.subr.bf16.mxu0 0
        %2138 = vmatpush1.bf16.msra.mxu0 %v1922
        %2139 = vmatprep.subr.bf16.mxu0 0
        %2140 = vmatpush1.bf16.msra.mxu0 %v1923
        %2141 = vmatprep.subr.bf16.mxu0 0
        %2142 = vmatpush1.bf16.msra.mxu0 %v1924
        %2143 = vmatprep.subr.bf16.mxu0 0
        %2144 = vmatpush1.bf16.msra.mxu0 %v1925
        %2145 = vmatprep.subr.bf16.mxu0 0
        %2146 = vmatpush1.bf16.msra.mxu0 %v1926
        %2147 = vmatprep.subr.bf16.mxu0 0
        %2148 = vmatpush1.bf16.msra.mxu0 %v1927
        %2149 = vmatprep.subr.bf16.mxu0 0
        %2150 = vmatpush1.bf16.msra.mxu0 %v1928
        %2151 = vmatprep.subr.bf16.mxu0 0
        %2152 = vmatpush1.bf16.msra.mxu0 %v1929
        %2153 = vmatprep.subr.bf16.mxu0 0
        %2154 = vmatpush1.bf16.msra.mxu0 %v1930
        %2155 = vmatprep.mubr.bf16.mxu0 %v1319
        %2156 = vmatmul.mubr.bf16.gmra.mrb[0].mxu0 %v1318
        %v2157 = vpop.f32.mrb[0].mxu0
        %v2158 = vadd.f32 %v2118, %v2157
        %v2159 = vpop.f32.mrb[0].mxu0
        %v2160 = vpop.f32.mrb[0].mxu0
        %v2161 = vpop.f32.mrb[0].mxu0
        %2162 = vdwg.mxu0
        %2163 = vmatprep.subr.bf16.mxu0 0
        %2164 = vmatpush1.bf16.msra.mxu0 %v1931
        %2165 = vmatprep.subr.bf16.mxu0 0
        %2166 = vmatpush1.bf16.msra.mxu0 %v1932
        %2167 = vmatprep.subr.bf16.mxu0 0
        %2168 = vmatpush1.bf16.msra.mxu0 %v1933
        %2169 = vmatprep.subr.bf16.mxu0 0
        %2170 = vmatpush1.bf16.msra.mxu0 %v1934
        %2171 = vmatprep.subr.bf16.mxu0 0
        %2172 = vmatpush1.bf16.msra.mxu0 %v1935
        %2173 = vmatprep.subr.bf16.mxu0 0
        %2174 = vmatpush1.bf16.msra.mxu0 %v1936
        %2175 = vmatprep.subr.bf16.mxu0 0
        %2176 = vmatpush1.bf16.msra.mxu0 %v1937
        %2177 = vmatprep.subr.bf16.mxu0 0
        %2178 = vmatpush1.bf16.msra.mxu0 %v1938
        %2179 = vmatprep.subr.bf16.mxu0 0
        %2180 = vmatpush1.bf16.msra.mxu0 %v1939
        %2181 = vmatprep.subr.bf16.mxu0 0
        %2182 = vmatpush1.bf16.msra.mxu0 %v1940
        %2183 = vmatprep.subr.bf16.mxu0 0
        %2184 = vmatpush1.bf16.msra.mxu0 %v1941
        %2185 = vmatprep.subr.bf16.mxu0 0
        %2186 = vmatpush1.bf16.msra.mxu0 %v1942
        %2187 = vmatprep.subr.bf16.mxu0 0
        %2188 = vmatpush1.bf16.msra.mxu0 %v1943
        %2189 = vmatprep.subr.bf16.mxu0 0
        %2190 = vmatpush1.bf16.msra.mxu0 %v1944
        %2191 = vmatprep.subr.bf16.mxu0 0
        %2192 = vmatpush1.bf16.msra.mxu0 %v1945
        %2193 = vmatprep.subr.bf16.mxu0 0
        %2194 = vmatpush1.bf16.msra.mxu0 %v1946
        %2195 = vmatprep.mubr.bf16.mxu0 %v1321
        %2196 = vmatmul.mubr.bf16.gmra.mrb[0].mxu0 %v1320
        %v2197 = vpop.f32.mrb[0].mxu0
        %v2198 = vadd.f32 %v2158, %v2197
        %v2199 = vpop.f32.mrb[0].mxu0
        %v2200 = vpop.f32.mrb[0].mxu0
        %v2201 = vpop.f32.mrb[0].mxu0
        %2202 = vdwg.mxu0
        %2203 = vmatprep.subr.bf16.mxu0 0
        %2204 = vmatpush1.bf16.msra.mxu0 %v1947
        %2205 = vmatprep.subr.bf16.mxu0 0
        %2206 = vmatpush1.bf16.msra.mxu0 %v1948
        %2207 = vmatprep.subr.bf16.mxu0 0
        %2208 = vmatpush1.bf16.msra.mxu0 %v1949
        %2209 = vmatprep.subr.bf16.mxu0 0
        %2210 = vmatpush1.bf16.msra.mxu0 %v1950
        %2211 = vmatprep.subr.bf16.mxu0 0
        %2212 = vmatpush1.bf16.msra.mxu0 %v1951
        %2213 = vmatprep.subr.bf16.mxu0 0
        %2214 = vmatpush1.bf16.msra.mxu0 %v1952
        %2215 = vmatprep.subr.bf16.mxu0 0
        %2216 = vmatpush1.bf16.msra.mxu0 %v1953
        %2217 = vmatprep.subr.bf16.mxu0 0
        %2218 = vmatpush1.bf16.msra.mxu0 %v1954
        %2219 = vmatprep.subr.bf16.mxu0 0
        %2220 = vmatpush1.bf16.msra.mxu0 %v1955
        %2221 = vmatprep.subr.bf16.mxu0 0
        %2222 = vmatpush1.bf16.msra.mxu0 %v1956
        %2223 = vmatprep.subr.bf16.mxu0 0
        %2224 = vmatpush1.bf16.msra.mxu0 %v1957
        %2225 = vmatprep.subr.bf16.mxu0 0
        %2226 = vmatpush1.bf16.msra.mxu0 %v1958
        %2227 = vmatprep.subr.bf16.mxu0 0
        %2228 = vmatpush1.bf16.msra.mxu0 %v1959
        %2229 = vmatprep.subr.bf16.mxu0 0
        %2230 = vmatpush1.bf16.msra.mxu0 %v1960
        %2231 = vmatprep.subr.bf16.mxu0 0
        %2232 = vmatpush1.bf16.msra.mxu0 %v1961
        %2233 = vmatprep.subr.bf16.mxu0 0
        %2234 = vmatpush1.bf16.msra.mxu0 %v1962
        %2235 = vmatprep.mubr.bf16.mxu0 %v1323
        %2236 = vmatmul.mubr.bf16.gmra.mrb[0].mxu0 %v1322
        %v2237 = vpop.f32.mrb[0].mxu0
        %v2238 = vadd.f32 %v2198, %v2237
        %v2239 = vpop.f32.mrb[0].mxu0
        %v2240 = vpop.f32.mrb[0].mxu0
        %v2241 = vpop.f32.mrb[0].mxu0
        %2242 = vdwg.mxu0
        %v2243 = vld [vmem:[%s8] sm:$0x1]
        %v2244 = vadd.f32 %v2238, %v2243
        %v2245 = vmax.f32 %v2244, 0.0
        %v2246 = vld [vmem:[%s9] sm:$0x1]
        %v2247 = vmul.f32 %v2245, %v2246
        %vm2248 = vcmask 1040384
        %v2249 = vsel %vm2248, %v2247, 0.0
        %2250 = vadd.xlane.f32.xlu0 %v2249
        %v2251 = vpop.xlane.xlu0 %2250
        %s2252 = sld [smem:[#allocation3]]
        %v2253 = vstv %s2252
        %v2254 = vadd.f32 %v2251, %v2253
        %v2255 = vlaneseq
        %v2256 = vshrl.u32 %v2255, 7
        %v2257 = vsub.s32 0, %v2256
        %v2258 = vrot.slane %v2254, %v2257
        %2259 = vst [vmem:[%s413] sm:$0xff] %v2258
      $region72: #{critic_forward.1} parent=63 // pred_fallthru
        _
      %p2260 = scmp.lt.s32.totalorder %s27, 1
      %s2261 = scalar_select %p2260, %s27, 1
      %s2262 = smul.addr %s2261, 8
      %s2263 = scalar_lea.vmem %s11, %s2262
      // Predicated region
      $region73: #{critic_forward.1} parent=63 // pred_check
        %p2264 = pneg %p291
      $region74: #{critic_forward.1} parent=63 // pred_check_branch
        %2266 = sbr.rel (%p2264) target = $region76
      $region75: #{critic_forward.1} parent=63 // pred_region
        _
      $region76: #{critic_forward.1} parent=63 // pred_fallthru
        _
    $region64: #{critic_forward.1} parent=5 // pred_fallthru
      _
    %p2267 = scmp.le.s32.totalorder 2, %s18
    // Predicated region
    $region77: #{critic_forward.1} parent=5 // pred_check
      %p2268 = pneg %p2267
    $region78: #{critic_forward.1} parent=5 // pred_check_branch
      %2270 = sbr.rel (%p2268) target = $region80
    $region79: #{critic_forward.1} parent=5 // pred_region
      %s2271 = ssub.s32 %s18, 2
      // Predicated region
      $region81: #{critic_forward.1} parent=79 // pred_check
        %p2272 = pneg %p297
      $region82: #{critic_forward.1} parent=79 // pred_check_branch
        %2274 = sbr.rel (%p2272) target = $region84
      $region83: #{critic_forward.1} parent=79 // pred_region
        %p2275 = scmp.lt.s32.totalorder %s29, 1
        %s2276 = scalar_select %p2275, %s29, 1
        %s2277 = smul.addr %s2276, 8
        %s2278 = scalar_lea.vmem %s11, %s2277
      $region84: #{critic_forward.1} parent=79 // pred_fallthru
        _
    $region80: #{critic_forward.1} parent=5 // pred_fallthru
      _
  $region6: #{critic_forward.1} parent=0 // loop_footer
    %s22 = sadd.s32 1, %s18
  $region7: #{critic_forward.1} parent=0 // loop_footer_branch
    %17 = sbr.rel target = $region3
  $region8: #{critic_forward.1} parent=0 // loop_exit
    _

</llo_original>
